<compile_context>
chip_gen: v7x
topology: tpu7x:2x2x1
jax: 0.10.0
libtpu: 0.0.40
codegen_flags: <defaults>
</compile_context>

<pallas_src>
import math
import numpy as np
import jax
import jax.numpy as jnp
from jax import lax
from jax.experimental import pallas as pl
from jax.experimental.pallas import tpu as pltpu


def bottleneck_kernel(x_ref, w1_ref, w2_ref, w3_ref, b1_ref, b2_ref, b3_ref,
                      o_ref, pad_ref):
    """One grid step = NB images.

    x_ref  : (NB, H, W, Cin)        input block (identity residual: Cin == Cout)
    w1_ref : (Cin,  Cp)     bf16    BN1 scale folded in, Cp = lane-padded Cmid
    w2_ref : (9*Cp, Cp)     bf16    BN2 scale folded in, (kh, kw, ci) flattened
    w3_ref : (Cp,   Cout)   bf16    BN3 scale folded in
    b*_ref : (1, C)         f32     fused BN biases (mid ones lane-padded)
    o_ref  : (NB, H, W, Cout)
    pad_ref: (NB, H+2, W+2, Cp) bf16 VMEM scratch (zero border) for conv2
    """
    NB, H, W, Cin = x_ref.shape
    Cp = w1_ref.shape[1]          # lane-padded mid channels (multiple of 128)
    Cout = w3_ref.shape[1]
    R = NB * H * W

    # ---- conv1 (1x1) + bn1 + relu -------------------------------------------
    # bf16 operands, f32 accumulation; do NOT keep an f32 copy of x alive.
    x_bf = x_ref[...].reshape(R, Cin).astype(jnp.bfloat16)
    y1 = jnp.dot(x_bf, w1_ref[...], preferred_element_type=jnp.float32)
    y1 = jnp.maximum(y1 + b1_ref[...], 0.0)            # (R, Cp); padded cols = 0

    # ---- conv2 (3x3, stride 1, pad 1) + bn2 + relu ---------------------------
    # Re-zero the scratch with dense, leading-dim-aligned stores every step and
    # overwrite the interior.  Must run EVERY step (per-core scratch under
    # "parallel" grid sharding) -- do not guard with program_id == 0.
    pad_ref[...] = jnp.zeros_like(pad_ref)
    pad_ref[:, 1:H + 1, 1:W + 1, :] = (
        y1.reshape(NB, H, W, Cp).astype(pad_ref.dtype))

    # im2col: concatenate the nine UN-reshaped windows along the lane axis
    # (each chunk is exactly 128*k lanes -> aligned, no cross-lane packing),
    # then a single leading-dim reshape.  No per-window relayout copies.
    wins = [pad_ref[:, di:di + H, dj:dj + W, :]
            for di in range(3) for dj in range(3)]
    col = jnp.concatenate(wins, axis=-1).reshape(R, 9 * Cp)        # bf16
    y2 = jnp.dot(col, w2_ref[...], preferred_element_type=jnp.float32)
    y2 = jnp.maximum(y2 + b2_ref[...], 0.0)                        # (R, Cp)

    # ---- conv3 (1x1) + bn3 ---------------------------------------------------
    y3 = jnp.dot(y2.astype(jnp.bfloat16), w3_ref[...],
                 preferred_element_type=jnp.float32)
    y3 = y3 + b3_ref[...]                                          # (R, Cout)

    # ---- residual add + relu (Cin == Cout, identity residual) ----------------
    res = x_ref[...].reshape(R, Cin).astype(jnp.float32)           # re-read x
    out = jnp.maximum(y3 + res, 0.0)
    o_ref[...] = out.reshape(NB, H, W, Cout).astype(o_ref.dtype)


def bottleneck_forward(x_nhwc, w1, w2col, w3, b1, b2, b3, *,
                       images_per_block=None):
    N, H, W, Cin = x_nhwc.shape
    Cp = w1.shape[1]
    Cout = w3.shape[1]
    assert Cin == Cout, "identity residual requires in_filters == out_filters*4"
    assert Cp % 128 == 0 and w2col.shape == (9 * Cp, Cp)
    # TODO(synk): stride != 1 and the downsample branch of _Bottleneck are not
    # implemented (identity-residual configuration only).

    # Generation-aware VMEM capacity (fall back to the v7x floor of 64 MiB).
    try:
        info = pltpu.get_tpu_info()
        vmem_cap = int(getattr(info, "vmem_capacity_bytes", 64 * 1024 * 1024))
    except Exception:
        vmem_cap = 64 * 1024 * 1024

    # Bigger M tiles on 128-MiB parts (v5e/v6e), tighter on v7x (64 MiB).
    rows_cap = 2048 if vmem_cap > 96 * 1024 * 1024 else 512

    # Fold several images into the matmul M dimension per grid step: largest
    # divisor of N under the row cap, but keep the grid >= 2 steps so
    # dimension_semantics=("parallel",) can shard across v7x's two TensorCores.
    if images_per_block is None:
        nb_max = max(1, N // 2)
        nb = 1
        for cand in range(1, nb_max + 1):
            if N % cand == 0 and cand * H * W <= rows_cap:
                nb = cand
    else:
        nb = images_per_block
    assert N % nb == 0
    grid = (N // nb,)

    full = lambda shape: pl.BlockSpec(shape, lambda b: (0,) * len(shape))

    itm = x_nhwc.dtype.itemsize
    flops = int(2 * N * H * W * (Cin * Cp + 9 * Cp * Cp + Cp * Cout))
    bytes_accessed = int(
        N * H * W * (Cin + Cout) * itm
        + (w1.size + w2col.size + w3.size) * 2
        + (b1.size + b2.size + b3.size) * 4)

    # Rough per-step VMEM footprint: double-buffered x/out blocks, padded
    # scratch, im2col operand, f32 intermediates, double-buffered weights.
    R = nb * H * W
    vmem_est = (2 * nb * H * W * (Cin + Cout) * itm
                + nb * (H + 2) * (W + 2) * Cp * 2
                + R * 9 * Cp * 2
                + R * (2 * Cp + Cout + Cin) * 4
                + 2 * (w1.size + w2col.size + w3.size) * 2
                + 2 * (b1.size + b2.size + b3.size) * 4)
    vmem_limit = int(min(max(4 * vmem_est, 32 * 1024 * 1024),
                         int(0.75 * vmem_cap)))

    return pl.pallas_call(
        bottleneck_kernel,
        out_shape=jax.ShapeDtypeStruct((N, H, W, Cout), x_nhwc.dtype),
        grid_spec=pltpu.PrefetchScalarGridSpec(
            num_scalar_prefetch=0,
            grid=grid,
            in_specs=[
                pl.BlockSpec((nb, H, W, Cin), lambda b: (b, 0, 0, 0)),
                full((Cin, Cp)),
                full((9 * Cp, Cp)),
                full((Cp, Cout)),
                full((1, Cp)), full((1, Cp)), full((1, Cout)),
            ],
            out_specs=pl.BlockSpec((nb, H, W, Cout), lambda b: (b, 0, 0, 0)),
            scratch_shapes=[pltpu.VMEM((nb, H + 2, W + 2, Cp), jnp.bfloat16)],
        ),
        compiler_params=pltpu.CompilerParams(
            dimension_semantics=("parallel",),
            vmem_limit_bytes=vmem_limit),
        cost_estimate=pl.CostEstimate(
            flops=flops, transcendentals=0, bytes_accessed=bytes_accessed),
    )(x_nhwc, w1, w2col, w3, b1, b2, b3)


def fuse_bn(gamma, beta, mean, var, eps=1e-5):
    scale = gamma / jnp.sqrt(var + eps)
    bias = beta - mean * scale
    return scale, bias


def prepare_params(w1_oihw, w2_oihw, w3_oihw, bn1, bn2, bn3, eps=1e-5):
    """PyTorch OIHW conv weights + BN stats -> kernel operands.

    BN scales are folded into the conv weights (bf16); only the fused BN
    biases (f32, shaped (1, C)) remain for the kernel epilogues.  The mid
    channel count (Cmid) is zero-padded up to a multiple of 128 so every conv2
    intermediate is lane-dense; padded channels stay exactly zero through relu.
    """
    s1, b1 = fuse_bn(*bn1, eps)
    s2, b2 = fuse_bn(*bn2, eps)
    s3, b3 = fuse_bn(*bn3, eps)

    cmid = w1_oihw.shape[0]
    cp = max(128, ((cmid + 127) // 128) * 128)
    pad = cp - cmid

    w1 = jnp.transpose(w1_oihw[:, :, 0, 0], (1, 0)) * s1[None, :]        # (Cin, Cmid)
    w2 = jnp.transpose(w2_oihw, (2, 3, 1, 0)) * s2[None, None, None, :]  # HWIO
    w3 = jnp.transpose(w3_oihw[:, :, 0, 0], (1, 0)) * s3[None, :]        # (Cmid, Cout)

    w1p = jnp.pad(w1, ((0, 0), (0, pad)))                 # (Cin, Cp)
    w2p = jnp.pad(w2, ((0, 0), (0, 0), (0, pad), (0, pad)))  # (3,3,Cp,Cp)
    w3p = jnp.pad(w3, ((0, pad), (0, 0)))                 # (Cp, Cout)
    b1p = jnp.pad(b1, ((0, pad),))
    b2p = jnp.pad(b2, ((0, pad),))

    w2col = w2p.reshape(9 * cp, cp)                       # (kh,kw,ci) flattened
    return (w1p.astype(jnp.bfloat16), w2col.astype(jnp.bfloat16),
            w3p.astype(jnp.bfloat16),
            b1p.reshape(1, -1).astype(jnp.float32),
            b2p.reshape(1, -1).astype(jnp.float32),
            b3.reshape(1, -1).astype(jnp.float32))


def reference_forward(x_nhwc, w1, w2col, w3, b1, b2, b3):
    """Pure-JAX reference with the same precision policy (bf16 matmul operands,
    f32 accumulation / epilogue) for validation.  Padded channels are zero, so
    the result equals the unpadded computation."""
    cp = w1.shape[1]
    w2 = w2col.reshape(3, 3, cp, cp)
    dn = ("NHWC", "HWIO", "NHWC")
    f32 = jnp.float32
    y = lax.conv_general_dilated(x_nhwc.astype(jnp.bfloat16), w1[None, None],
                                 (1, 1), "VALID", dimension_numbers=dn,
                                 preferred_element_type=f32)
    y = jnp.maximum(y + b1.reshape(1, 1, 1, -1), 0.0)
    y = lax.conv_general_dilated(y.astype(jnp.bfloat16), w2, (1, 1),
                                 ((1, 1), (1, 1)), dimension_numbers=dn,
                                 preferred_element_type=f32)
    y = jnp.maximum(y + b2.reshape(1, 1, 1, -1), 0.0)
    y = lax.conv_general_dilated(y.astype(jnp.bfloat16), w3[None, None],
                                 (1, 1), "VALID", dimension_numbers=dn,
                                 preferred_element_type=f32)
    y = y + b3.reshape(1, 1, 1, -1)
    return jnp.maximum(y + x_nhwc.astype(f32), 0.0).astype(x_nhwc.dtype)


if __name__ == "__main__":
    # _Bottleneck(in_filters=128, out_filters=32), stride=1, downsample=None
    # => expansion=4 and identity residual require in_filters == out_filters*4.
    N, H, W = 2, 8, 8
    out_filters = 32
    in_filters = out_filters * 4          # 128
    cout = out_filters * 4                # 128

    key = jax.random.PRNGKey(0)
    ks = jax.random.split(key, 8)

    # Input in PyTorch NCHW, moved to NHWC (channels -> lanes) for the kernel.
    # (bf16 activations are also supported and halve HBM traffic on v5e/v6e.)
    x_nchw = jax.random.normal(ks[0], (N, in_filters, H, W), jnp.float32)
    x_nhwc = jnp.transpose(x_nchw, (0, 2, 3, 1))

    # Conv weights in PyTorch OIHW layout (He-ish scaling, bias=False).
    w1_oihw = jax.random.normal(ks[1], (out_filters, in_filters, 1, 1),
                                jnp.float32) / math.sqrt(in_filters)
    w2_oihw = jax.random.normal(ks[2], (out_filters, out_filters, 3, 3),
                                jnp.float32) / math.sqrt(9 * out_filters)
    w3_oihw = jax.random.normal(ks[3], (cout, out_filters, 1, 1),
                                jnp.float32) / math.sqrt(out_filters)

    # BatchNorm parameters (eval mode, running stats).
    def bn_params(k, c):
        k1, k2, k3, k4 = jax.random.split(k, 4)
        gamma = 1.0 + 0.1 * jax.random.normal(k1, (c,), jnp.float32)
        beta = 0.1 * jax.random.normal(k2, (c,), jnp.float32)
        mean = 0.05 * jax.random.normal(k3, (c,), jnp.float32)
        var = 1.0 + 0.1 * jnp.abs(jax.random.normal(k4, (c,), jnp.float32))
        return gamma, beta, mean, var

    bn1 = bn_params(ks[4], out_filters)
    bn2 = bn_params(ks[5], out_filters)
    bn3 = bn_params(ks[6], cout)

    w1, w2col, w3, b1, b2, b3 = prepare_params(w1_oihw, w2_oihw, w3_oihw,
                                               bn1, bn2, bn3)

    out = bottleneck_forward(x_nhwc, w1, w2col, w3, b1, b2, b3)
    out = jax.block_until_ready(out)

    ref = reference_forward(x_nhwc, w1, w2col, w3, b1, b2, b3)
    np.testing.assert_allclose(np.asarray(out), np.asarray(ref),
                               rtol=1e-2, atol=1e-2)

    print("KERNEL_OK")
</pallas_src>

<mosaic_0001>
module attributes {stable_mosaic.version = 11 : i64} {
  func.func @bottleneck_kernel(%arg0: i32, %arg1: memref<1x8x8x128xf32, #tpu.memory_space<vmem>>, %arg2: memref<128x128xbf16, #tpu.memory_space<vmem>>, %arg3: memref<1152x128xbf16, #tpu.memory_space<vmem>>, %arg4: memref<128x128xbf16, #tpu.memory_space<vmem>>, %arg5: memref<1x128xf32, #tpu.memory_space<vmem>>, %arg6: memref<1x128xf32, #tpu.memory_space<vmem>>, %arg7: memref<1x128xf32, #tpu.memory_space<vmem>>, %arg8: memref<1x8x8x128xf32, #tpu.memory_space<vmem>>, %arg9: memref<1x10x10x128xbf16, #tpu.memory_space<vmem>>) attributes {dimension_semantics = [#tpu.dimension_semantics<parallel>], iteration_bounds = array<i64: 2>, scalar_prefetch = 0 : i64, scratch_operands = 1 : i64, tpu.core_type = #tpu.core_type<tc>, window_params = [{transform_indices = @transform_0, window_bounds = array<i64: 1, 8, 8, 128>}, {pipeline_mode = #tpu.pipeline_mode<synchronous>, transform_indices = @transform_1, window_bounds = array<i64: 128, 128>}, {pipeline_mode = #tpu.pipeline_mode<synchronous>, transform_indices = @transform_2, window_bounds = array<i64: 1152, 128>}, {pipeline_mode = #tpu.pipeline_mode<synchronous>, transform_indices = @transform_3, window_bounds = array<i64: 128, 128>}, {pipeline_mode = #tpu.pipeline_mode<synchronous>, transform_indices = @transform_4, window_bounds = array<i64: 1, 128>}, {pipeline_mode = #tpu.pipeline_mode<synchronous>, transform_indices = @transform_5, window_bounds = array<i64: 1, 128>}, {pipeline_mode = #tpu.pipeline_mode<synchronous>, transform_indices = @transform_6, window_bounds = array<i64: 1, 128>}, {transform_indices = @transform_7, window_bounds = array<i64: 1, 8, 8, 128>}]} {
    %c0 = arith.constant 0 : index
    %c0_0 = arith.constant 0 : index
    %c0_1 = arith.constant 0 : index
    %c0_2 = arith.constant 0 : index
    %0 = vector.load %arg1[%c0, %c0_0, %c0_1, %c0_2] : memref<1x8x8x128xf32, #tpu.memory_space<vmem>>, vector<1x8x8x128xf32>
    %1 = vector.shape_cast %0 : vector<1x8x8x128xf32> to vector<64x128xf32>
    %2 = arith.truncf %1 : vector<64x128xf32> to vector<64x128xbf16>
    %c0_3 = arith.constant 0 : index
    %c0_4 = arith.constant 0 : index
    %3 = vector.load %arg2[%c0_3, %c0_4] : memref<128x128xbf16, #tpu.memory_space<vmem>>, vector<128x128xbf16>
    %cst = arith.constant dense<0.000000e+00> : vector<64x128xf32>
    %4 = tpu.matmul %2, %3, %cst {dimension_numbers = #tpu.dot_dimension_numbers<[1], [0], [0], [1], [0, 0, 1, 1], [], []>} : vector<64x128xbf16>, vector<128x128xbf16>, vector<64x128xf32> -> vector<64x128xf32>
    %c0_5 = arith.constant 0 : index
    %c0_6 = arith.constant 0 : index
    %5 = vector.load %arg5[%c0_5, %c0_6] : memref<1x128xf32, #tpu.memory_space<vmem>>, vector<1x128xf32>
    %6 = vector.broadcast %5 : vector<1x128xf32> to vector<64x128xf32>
    %7 = arith.addf %4, %6 : vector<64x128xf32>
    %cst_7 = arith.constant 0.000000e+00 : f32
    %8 = vector.broadcast %cst_7 : f32 to vector<64x128xf32>
    %9 = arith.maximumf %7, %8 : vector<64x128xf32>
    %cst_8 = arith.constant 0.000000e+00 : bf16
    %10 = vector.broadcast %cst_8 : bf16 to vector<1x10x10x128xbf16>
    %c0_9 = arith.constant 0 : index
    %c0_10 = arith.constant 0 : index
    %c0_11 = arith.constant 0 : index
    %c0_12 = arith.constant 0 : index
    %11 = vector.load %arg9[%c0_9, %c0_10, %c0_11, %c0_12] : memref<1x10x10x128xbf16, #tpu.memory_space<vmem>>, vector<1x10x10x128xbf16>
    tpu.vector_store %arg9[%c0_9, %c0_10, %c0_11, %c0_12], %10 {strides = array<i32>} : memref<1x10x10x128xbf16, #tpu.memory_space<vmem>>, vector<1x10x10x128xbf16>,
    %12 = vector.shape_cast %9 : vector<64x128xf32> to vector<1x8x8x128xf32>
    %13 = arith.truncf %12 : vector<1x8x8x128xf32> to vector<1x8x8x128xbf16>
    %c0_13 = arith.constant 0 : index
    %c1 = arith.constant 1 : index
    %c1_14 = arith.constant 1 : index
    %c0_15 = arith.constant 0 : index
    %14 = vector.load %arg9[%c0_13, %c1, %c1_14, %c0_15] : memref<1x10x10x128xbf16, #tpu.memory_space<vmem>>, vector<1x8x8x128xbf16>
    tpu.vector_store %arg9[%c0_13, %c1, %c1_14, %c0_15], %13 {strides = array<i32>} : memref<1x10x10x128xbf16, #tpu.memory_space<vmem>>, vector<1x8x8x128xbf16>,
    %c0_16 = arith.constant 0 : index
    %c0_17 = arith.constant 0 : index
    %c0_18 = arith.constant 0 : index
    %c0_19 = arith.constant 0 : index
    %15 = vector.load %arg9[%c0_16, %c0_17, %c0_18, %c0_19] : memref<1x10x10x128xbf16, #tpu.memory_space<vmem>>, vector<1x8x8x128xbf16>
    %c0_20 = arith.constant 0 : index
    %c0_21 = arith.constant 0 : index
    %c1_22 = arith.constant 1 : index
    %c0_23 = arith.constant 0 : index
    %16 = vector.load %arg9[%c0_20, %c0_21, %c1_22, %c0_23] : memref<1x10x10x128xbf16, #tpu.memory_space<vmem>>, vector<1x8x8x128xbf16>
    %c0_24 = arith.constant 0 : index
    %c0_25 = arith.constant 0 : index
    %c2 = arith.constant 2 : index
    %c0_26 = arith.constant 0 : index
    %17 = vector.load %arg9[%c0_24, %c0_25, %c2, %c0_26] : memref<1x10x10x128xbf16, #tpu.memory_space<vmem>>, vector<1x8x8x128xbf16>
    %c0_27 = arith.constant 0 : index
    %c1_28 = arith.constant 1 : index
    %c0_29 = arith.constant 0 : index
    %c0_30 = arith.constant 0 : index
    %18 = vector.load %arg9[%c0_27, %c1_28, %c0_29, %c0_30] : memref<1x10x10x128xbf16, #tpu.memory_space<vmem>>, vector<1x8x8x128xbf16>
    %c0_31 = arith.constant 0 : index
    %c1_32 = arith.constant 1 : index
    %c1_33 = arith.constant 1 : index
    %c0_34 = arith.constant 0 : index
    %19 = vector.load %arg9[%c0_31, %c1_32, %c1_33, %c0_34] : memref<1x10x10x128xbf16, #tpu.memory_space<vmem>>, vector<1x8x8x128xbf16>
    %c0_35 = arith.constant 0 : index
    %c1_36 = arith.constant 1 : index
    %c2_37 = arith.constant 2 : index
    %c0_38 = arith.constant 0 : index
    %20 = vector.load %arg9[%c0_35, %c1_36, %c2_37, %c0_38] : memref<1x10x10x128xbf16, #tpu.memory_space<vmem>>, vector<1x8x8x128xbf16>
    %c0_39 = arith.constant 0 : index
    %c2_40 = arith.constant 2 : index
    %c0_41 = arith.constant 0 : index
    %c0_42 = arith.constant 0 : index
    %21 = vector.load %arg9[%c0_39, %c2_40, %c0_41, %c0_42] : memref<1x10x10x128xbf16, #tpu.memory_space<vmem>>, vector<1x8x8x128xbf16>
    %c0_43 = arith.constant 0 : index
    %c2_44 = arith.constant 2 : index
    %c1_45 = arith.constant 1 : index
    %c0_46 = arith.constant 0 : index
    %22 = vector.load %arg9[%c0_43, %c2_44, %c1_45, %c0_46] : memref<1x10x10x128xbf16, #tpu.memory_space<vmem>>, vector<1x8x8x128xbf16>
    %c0_47 = arith.constant 0 : index
    %c2_48 = arith.constant 2 : index
    %c2_49 = arith.constant 2 : index
    %c0_50 = arith.constant 0 : index
    %23 = vector.load %arg9[%c0_47, %c2_48, %c2_49, %c0_50] : memref<1x10x10x128xbf16, #tpu.memory_space<vmem>>, vector<1x8x8x128xbf16>
    %24 = tpu.concatenate %15, %16, %17, %18, %19, %20, %21, %22, %23 in 3 : vector<1x8x8x128xbf16>, vector<1x8x8x128xbf16>, vector<1x8x8x128xbf16>, vector<1x8x8x128xbf16>, vector<1x8x8x128xbf16>, vector<1x8x8x128xbf16>, vector<1x8x8x128xbf16>, vector<1x8x8x128xbf16>, vector<1x8x8x128xbf16> -> vector<1x8x8x1152xbf16>
    %25 = vector.shape_cast %24 : vector<1x8x8x1152xbf16> to vector<64x1152xbf16>
    %c0_51 = arith.constant 0 : index
    %c0_52 = arith.constant 0 : index
    %26 = vector.load %arg3[%c0_51, %c0_52] : memref<1152x128xbf16, #tpu.memory_space<vmem>>, vector<1152x128xbf16>
    %cst_53 = arith.constant dense<0.000000e+00> : vector<64x128xf32>
    %27 = tpu.matmul %25, %26, %cst_53 {dimension_numbers = #tpu.dot_dimension_numbers<[1], [0], [0], [1], [0, 0, 1, 1], [], []>} : vector<64x1152xbf16>, vector<1152x128xbf16>, vector<64x128xf32> -> vector<64x128xf32>
    %c0_54 = arith.constant 0 : index
    %c0_55 = arith.constant 0 : index
    %28 = vector.load %arg6[%c0_54, %c0_55] : memref<1x128xf32, #tpu.memory_space<vmem>>, vector<1x128xf32>
    %29 = vector.broadcast %28 : vector<1x128xf32> to vector<64x128xf32>
    %30 = arith.addf %27, %29 : vector<64x128xf32>
    %cst_56 = arith.constant 0.000000e+00 : f32
    %31 = vector.broadcast %cst_56 : f32 to vector<64x128xf32>
    %32 = arith.maximumf %30, %31 : vector<64x128xf32>
    %33 = arith.truncf %32 : vector<64x128xf32> to vector<64x128xbf16>
    %c0_57 = arith.constant 0 : index
    %c0_58 = arith.constant 0 : index
    %34 = vector.load %arg4[%c0_57, %c0_58] : memref<128x128xbf16, #tpu.memory_space<vmem>>, vector<128x128xbf16>
    %cst_59 = arith.constant dense<0.000000e+00> : vector<64x128xf32>
    %35 = tpu.matmul %33, %34, %cst_59 {dimension_numbers = #tpu.dot_dimension_numbers<[1], [0], [0], [1], [0, 0, 1, 1], [], []>} : vector<64x128xbf16>, vector<128x128xbf16>, vector<64x128xf32> -> vector<64x128xf32>
    %c0_60 = arith.constant 0 : index
    %c0_61 = arith.constant 0 : index
    %36 = vector.load %arg7[%c0_60, %c0_61] : memref<1x128xf32, #tpu.memory_space<vmem>>, vector<1x128xf32>
    %37 = vector.broadcast %36 : vector<1x128xf32> to vector<64x128xf32>
    %38 = arith.addf %35, %37 : vector<64x128xf32>
    %c0_62 = arith.constant 0 : index
    %c0_63 = arith.constant 0 : index
    %c0_64 = arith.constant 0 : index
    %c0_65 = arith.constant 0 : index
    %39 = vector.load %arg1[%c0_62, %c0_63, %c0_64, %c0_65] : memref<1x8x8x128xf32, #tpu.memory_space<vmem>>, vector<1x8x8x128xf32>
    %40 = vector.shape_cast %39 : vector<1x8x8x128xf32> to vector<64x128xf32>
    %41 = arith.addf %38, %40 : vector<64x128xf32>
    %cst_66 = arith.constant 0.000000e+00 : f32
    %42 = vector.broadcast %cst_66 : f32 to vector<64x128xf32>
    %43 = arith.maximumf %41, %42 : vector<64x128xf32>
    %44 = vector.shape_cast %43 : vector<64x128xf32> to vector<1x8x8x128xf32>
    %c0_67 = arith.constant 0 : index
    %c0_68 = arith.constant 0 : index
    %c0_69 = arith.constant 0 : index
    %c0_70 = arith.constant 0 : index
    %45 = vector.load %arg8[%c0_67, %c0_68, %c0_69, %c0_70] : memref<1x8x8x128xf32, #tpu.memory_space<vmem>>, vector<1x8x8x128xf32>
    tpu.vector_store %arg8[%c0_67, %c0_68, %c0_69, %c0_70], %44 {strides = array<i32>} : memref<1x8x8x128xf32, #tpu.memory_space<vmem>>, vector<1x8x8x128xf32>,
    return
  }
  func.func @transform_0(%arg0: i32) -> (i32, i32, i32, i32) {
    %c0_i32 = arith.constant 0 : i32
    %c0_i32_0 = arith.constant 0 : i32
    %c0_i32_1 = arith.constant 0 : i32
    %c0_i32_2 = arith.constant 0 : i32
    return %arg0, %c0_i32, %c0_i32_0, %c0_i32_1 : i32, i32, i32, i32
  }
  func.func @transform_1(%arg0: i32) -> (i32, i32) {
    %c0_i32 = arith.constant 0 : i32
    %c0_i32_0 = arith.constant 0 : i32
    %c0_i32_1 = arith.constant 0 : i32
    return %c0_i32, %c0_i32_0 : i32, i32
  }
  func.func @transform_2(%arg0: i32) -> (i32, i32) {
    %c0_i32 = arith.constant 0 : i32
    %c0_i32_0 = arith.constant 0 : i32
    %c0_i32_1 = arith.constant 0 : i32
    return %c0_i32, %c0_i32_0 : i32, i32
  }
  func.func @transform_3(%arg0: i32) -> (i32, i32) {
    %c0_i32 = arith.constant 0 : i32
    %c0_i32_0 = arith.constant 0 : i32
    %c0_i32_1 = arith.constant 0 : i32
    return %c0_i32, %c0_i32_0 : i32, i32
  }
  func.func @transform_4(%arg0: i32) -> (i32, i32) {
    %c0_i32 = arith.constant 0 : i32
    %c0_i32_0 = arith.constant 0 : i32
    %c0_i32_1 = arith.constant 0 : i32
    return %c0_i32, %c0_i32_0 : i32, i32
  }
  func.func @transform_5(%arg0: i32) -> (i32, i32) {
    %c0_i32 = arith.constant 0 : i32
    %c0_i32_0 = arith.constant 0 : i32
    %c0_i32_1 = arith.constant 0 : i32
    return %c0_i32, %c0_i32_0 : i32, i32
  }
  func.func @transform_6(%arg0: i32) -> (i32, i32) {
    %c0_i32 = arith.constant 0 : i32
    %c0_i32_0 = arith.constant 0 : i32
    %c0_i32_1 = arith.constant 0 : i32
    return %c0_i32, %c0_i32_0 : i32, i32
  }
  func.func @transform_7(%arg0: i32) -> (i32, i32, i32, i32) {
    %c0_i32 = arith.constant 0 : i32
    %c0_i32_0 = arith.constant 0 : i32
    %c0_i32_1 = arith.constant 0 : i32
    %c0_i32_2 = arith.constant 0 : i32
    return %arg0, %c0_i32, %c0_i32_0, %c0_i32_1 : i32, i32, i32, i32
  }
}

</mosaic_0001>

<llo_original>
// kernel: tpu_custom_call.1
$region0: #{tpu_custom_call.1}
  #allocation0 [shape = 'u32[]', space=smem, size = 0x4, offset = 0x4, fixed_abs, tag = 'smem constant byte address 0x4 - core index']
  #allocation1 [shape = 'u32[144,128]{1,0:T(1,128)}', space=vmem, size = 0x12000, scoped, tag = 'internal scratch']
  #allocation2 [shape = 'bf16[1,10,10,128]{3,2,1,0:T(8,128)(2,1)}', space=vmem, size = 0xa000, scoped, tag = 'scratch operand']
  %s0 = inlined_call_operand.hbm [shape: f32[2,8,8,128], index: 0, kind: input, shape index: {}]
  %s1 = inlined_call_operand.hbm [shape: bf16[128,128], index: 1, kind: input, shape index: {}]
  %s2 = inlined_call_operand.hbm [shape: bf16[1152,128], index: 2, kind: input, shape index: {}]
  %s3 = inlined_call_operand.hbm [shape: bf16[128,128], index: 3, kind: input, shape index: {}]
  %s4 = inlined_call_operand.vmem [shape: f32[1,128], index: 4, kind: input, shape index: {}]
  %s5 = inlined_call_operand.vmem [shape: f32[1,128], index: 5, kind: input, shape index: {}]
  %s6 = inlined_call_operand.vmem [shape: f32[1,128], index: 6, kind: input, shape index: {}]
  %s7 = inlined_call_operand.hbm [shape: f32[2,8,8,128], index: 7, kind: output, shape index: {}]
  %s8 = sld [smem:[#allocation0]]
  $region77: #{tpu_custom_call.1} parent=0
    _
  %s10 = ssub.s32 1, %s8
  %s11 = scalar_select 0, %s10, %s8
  $region1: #{tpu_custom_call.1} parent=0
    #allocation3 [shape = 'u8[65536]{0}', space=vmem, size = 0x10000, scoped, tag = 'input window, operand 0']
    #allocation4 [shape = 's32[2]{0}', space=sflag, size = 0x8, scoped, tag = 'scoped memory for tpu_custom_call.1']
    #allocation5 [shape = 's32[2]{0}', space=sflag, size = 0x8, scoped, tag = 'scoped memory for tpu_custom_call.1']
    #allocation6 [shape = 'u8[32768]{0}', space=vmem, size = 0x8000, scoped, tag = 'input window, operand 1, single buffered']
    #allocation7 [shape = 's32[1]{0}', space=sflag, size = 0x4, scoped, tag = 'scoped memory for tpu_custom_call.1']
    #allocation8 [shape = 'u8[294912]{0}', space=vmem, size = 0x48000, scoped, tag = 'input window, operand 2, single buffered']
    #allocation9 [shape = 'u8[32768]{0}', space=vmem, size = 0x8000, scoped, tag = 'input window, operand 3, single buffered']
    #allocation10 [shape = 's32[1]{0}', space=sflag, size = 0x4, scoped, tag = 'scoped memory for tpu_custom_call.1']
    #allocation11 [shape = 'u8[65536]{0}', space=vmem, size = 0x10000, scoped, tag = 'output window, operand 0']
    %12 = vsyncpa [#allocation4], 0
    %s13 = scalar_lea.sflag [#allocation4], 1
    %14 = vsyncpa %s13, 0
    %15 = vsyncpa [#allocation7], 0
    %16 = vsyncpa [#allocation10], 0
    %17 = vsyncpa [#allocation5], 0
    %s18 = scalar_lea.sflag [#allocation5], 1
    %19 = vsyncpa %s18, 0
    loop: start=0, step=1, limit=4
    $region2: #{tpu_custom_call.1} parent=1 // loop_pre_header
      _
    $region3: #{tpu_custom_call.1} parent=1 // loop_header
      %s21 = sphi 0, %s25
      %p22 = scmp.ge.s32.totalorder %s21, 4
      %s31 = sphi 0, %s33
      %s34 = sphi 0, %s31
      %s35 = sphi 0, %s34
      %s51 = sphi 0, %s35
      %s55 = sphi 0, %s55
      %s57 = sphi 0, %s55
      %s58 = sphi 0, %s57
      %s72 = sphi 0, %s58
      %s76 = sphi 0, %s76
      %s78 = sphi 0, %s76
      %s79 = sphi 0, %s78
      %s93 = sphi 0, %s79
      %s97 = sphi 0, %s97
      %s99 = sphi 0, %s97
      %s100 = sphi 0, %s99
      %s114 = sphi 0, %s100
      %s118 = sphi 0, %s118
      %s120 = sphi 0, %s118
      %s121 = sphi 0, %s120
      %s135 = sphi 0, %s121
      %s139 = sphi 0, %s139
      %s141 = sphi 0, %s139
      %s142 = sphi 0, %s141
      %s156 = sphi 0, %s142
      %s160 = sphi 0, %s160
      %s162 = sphi 0, %s160
      %s163 = sphi 0, %s162
      %s177 = sphi 0, %s163
      %s183 = sphi 0, %s185
      %s186 = sphi 0, %s183
      %s187 = sphi 0, %s186
      %s203 = sphi 0, %s187
    $region4: #{tpu_custom_call.1} parent=1 // loop_header_branch
      %24 = sbr.rel (%p22) target = $region8
    $region5: #{tpu_custom_call.1} parent=1 // loop_body
      %s26 = ssub.s32 %s21, 1
      %s27 = ssub.s32 %s21, 2
      %s28 = sadd.s32 %s21, 1
      %s29 = ssub.s32 %s21, %s28
      %p30 = scmp.eq.s32.totalorder %s29, 0
      %s32 = sadd.s32 %s31, 1
      %s33 = scalar_select %p30, %s31, %s32
      %p36 = pneg %p30
      %p37 = scmp.eq.s32.totalorder %s21, 1
      %p38 = por %p36, %p37
      %p39 = scmp.ne.s32.totalorder %s31, %s34
      %p40 = scmp.eq.s32.totalorder %s21, 0
      %p41 = por %p39, %p40
      %p42 = scmp.ne.s32.totalorder %s31, %s34
      %p43 = scmp.eq.s32.totalorder %s26, 1
      %p44 = por %p42, %p43
      %p45 = scmp.ne.s32.totalorder %s34, %s35
      %p46 = scmp.eq.s32.totalorder %s26, 0
      %p47 = por %p45, %p46
      %p48 = scmp.ne.s32.totalorder %s34, %s35
      %p49 = scmp.eq.s32.totalorder %s27, 1
      %p50 = por %p48, %p49
      %p52 = scmp.ne.s32.totalorder %s35, %s51
      %p53 = scmp.eq.s32.totalorder %s27, 0
      %p54 = por %p52, %p53
      %s56 = sadd.s32 %s55, 1
      %p59 = scmp.eq.s32.totalorder %s21, 1
      %p60 = scmp.ne.s32.totalorder %s55, %s57
      %p61 = scmp.eq.s32.totalorder %s21, 0
      %p62 = por %p60, %p61
      %p63 = scmp.ne.s32.totalorder %s55, %s57
      %p64 = scmp.eq.s32.totalorder %s26, 1
      %p65 = por %p63, %p64
      %p66 = scmp.ne.s32.totalorder %s57, %s58
      %p67 = scmp.eq.s32.totalorder %s26, 0
      %p68 = por %p66, %p67
      %p69 = scmp.ne.s32.totalorder %s57, %s58
      %p70 = scmp.eq.s32.totalorder %s27, 1
      %p71 = por %p69, %p70
      %p73 = scmp.ne.s32.totalorder %s58, %s72
      %p74 = scmp.eq.s32.totalorder %s27, 0
      %p75 = por %p73, %p74
      %s77 = sadd.s32 %s76, 1
      %p80 = scmp.eq.s32.totalorder %s21, 1
      %p81 = scmp.ne.s32.totalorder %s76, %s78
      %p82 = scmp.eq.s32.totalorder %s21, 0
      %p83 = por %p81, %p82
      %p84 = scmp.ne.s32.totalorder %s76, %s78
      %p85 = scmp.eq.s32.totalorder %s26, 1
      %p86 = por %p84, %p85
      %p87 = scmp.ne.s32.totalorder %s78, %s79
      %p88 = scmp.eq.s32.totalorder %s26, 0
      %p89 = por %p87, %p88
      %p90 = scmp.ne.s32.totalorder %s78, %s79
      %p91 = scmp.eq.s32.totalorder %s27, 1
      %p92 = por %p90, %p91
      %p94 = scmp.ne.s32.totalorder %s79, %s93
      %p95 = scmp.eq.s32.totalorder %s27, 0
      %p96 = por %p94, %p95
      %s98 = sadd.s32 %s97, 1
      %p101 = scmp.eq.s32.totalorder %s21, 1
      %p102 = scmp.ne.s32.totalorder %s97, %s99
      %p103 = scmp.eq.s32.totalorder %s21, 0
      %p104 = por %p102, %p103
      %p105 = scmp.ne.s32.totalorder %s97, %s99
      %p106 = scmp.eq.s32.totalorder %s26, 1
      %p107 = por %p105, %p106
      %p108 = scmp.ne.s32.totalorder %s99, %s100
      %p109 = scmp.eq.s32.totalorder %s26, 0
      %p110 = por %p108, %p109
      %p111 = scmp.ne.s32.totalorder %s99, %s100
      %p112 = scmp.eq.s32.totalorder %s27, 1
      %p113 = por %p111, %p112
      %p115 = scmp.ne.s32.totalorder %s100, %s114
      %p116 = scmp.eq.s32.totalorder %s27, 0
      %p117 = por %p115, %p116
      %s119 = sadd.s32 %s118, 1
      %p122 = scmp.eq.s32.totalorder %s21, 1
      %p123 = scmp.ne.s32.totalorder %s118, %s120
      %p124 = scmp.eq.s32.totalorder %s21, 0
      %p125 = por %p123, %p124
      %p126 = scmp.ne.s32.totalorder %s118, %s120
      %p127 = scmp.eq.s32.totalorder %s26, 1
      %p128 = por %p126, %p127
      %p129 = scmp.ne.s32.totalorder %s120, %s121
      %p130 = scmp.eq.s32.totalorder %s26, 0
      %p131 = por %p129, %p130
      %p132 = scmp.ne.s32.totalorder %s120, %s121
      %p133 = scmp.eq.s32.totalorder %s27, 1
      %p134 = por %p132, %p133
      %p136 = scmp.ne.s32.totalorder %s121, %s135
      %p137 = scmp.eq.s32.totalorder %s27, 0
      %p138 = por %p136, %p137
      %s140 = sadd.s32 %s139, 1
      %p143 = scmp.eq.s32.totalorder %s21, 1
      %p144 = scmp.ne.s32.totalorder %s139, %s141
      %p145 = scmp.eq.s32.totalorder %s21, 0
      %p146 = por %p144, %p145
      %p147 = scmp.ne.s32.totalorder %s139, %s141
      %p148 = scmp.eq.s32.totalorder %s26, 1
      %p149 = por %p147, %p148
      %p150 = scmp.ne.s32.totalorder %s141, %s142
      %p151 = scmp.eq.s32.totalorder %s26, 0
      %p152 = por %p150, %p151
      %p153 = scmp.ne.s32.totalorder %s141, %s142
      %p154 = scmp.eq.s32.totalorder %s27, 1
      %p155 = por %p153, %p154
      %p157 = scmp.ne.s32.totalorder %s142, %s156
      %p158 = scmp.eq.s32.totalorder %s27, 0
      %p159 = por %p157, %p158
      %s161 = sadd.s32 %s160, 1
      %p164 = scmp.eq.s32.totalorder %s21, 1
      %p165 = scmp.ne.s32.totalorder %s160, %s162
      %p166 = scmp.eq.s32.totalorder %s21, 0
      %p167 = por %p165, %p166
      %p168 = scmp.ne.s32.totalorder %s160, %s162
      %p169 = scmp.eq.s32.totalorder %s26, 1
      %p170 = por %p168, %p169
      %p171 = scmp.ne.s32.totalorder %s162, %s163
      %p172 = scmp.eq.s32.totalorder %s26, 0
      %p173 = por %p171, %p172
      %p174 = scmp.ne.s32.totalorder %s162, %s163
      %p175 = scmp.eq.s32.totalorder %s27, 1
      %p176 = por %p174, %p175
      %p178 = scmp.ne.s32.totalorder %s163, %s177
      %p179 = scmp.eq.s32.totalorder %s27, 0
      %p180 = por %p178, %p179
      %s181 = ssub.s32 %s21, %s28
      %p182 = scmp.eq.s32.totalorder %s181, 0
      %s184 = sadd.s32 %s183, 1
      %s185 = scalar_select %p182, %s183, %s184
      %p188 = pneg %p182
      %p189 = scmp.eq.s32.totalorder %s21, 1
      %p190 = por %p188, %p189
      %p191 = scmp.ne.s32.totalorder %s183, %s186
      %p192 = scmp.eq.s32.totalorder %s21, 0
      %p193 = por %p191, %p192
      %p194 = scmp.ne.s32.totalorder %s183, %s186
      %p195 = scmp.eq.s32.totalorder %s26, 1
      %p196 = por %p194, %p195
      %p197 = scmp.ne.s32.totalorder %s186, %s187
      %p198 = scmp.eq.s32.totalorder %s26, 0
      %p199 = por %p197, %p198
      %p200 = scmp.ne.s32.totalorder %s186, %s187
      %p201 = scmp.eq.s32.totalorder %s27, 1
      %p202 = por %p200, %p201
      %p204 = scmp.ne.s32.totalorder %s187, %s203
      %p205 = scmp.eq.s32.totalorder %s27, 0
      %p206 = por %p204, %p205
      %p207 = scmp.le.s32.totalorder 1, %s21
      %p208 = scmp.lt.s32.totalorder %s21, 3
      %p209 = pnand %p207, %p208
      %p210 = pneg %p209
      // Predicated region
      $region9: #{tpu_custom_call.1} parent=5 // pred_check
        _
      $region10: #{tpu_custom_call.1} parent=5 // pred_check_branch
        %212 = sbr.rel (%p209) target = $region12
      $region11: #{tpu_custom_call.1} parent=5 // pred_region
        %s213 = ssub.s32 %s21, 1
        // Predicated region
        $region13: #{tpu_custom_call.1} parent=11 // pred_check
          %p214 = pneg %p68
        $region14: #{tpu_custom_call.1} parent=11 // pred_check_branch
          %216 = sbr.rel (%p214) target = $region16
        $region15: #{tpu_custom_call.1} parent=11 // pred_region
          %s218 = ssub.s32 1024, 1024
          %219 = vsyncadd [#allocation7], %s218
          %s220 = sshll.u32 [#allocation6], 4
          %s221 = int_to_ptr.vmem [resolvable:$true] %s220
          %226 = dma.hbm_to_vmem [thread:$0]  %s1, 1024, %s221, [#allocation7], 64, 64, 4
        $region16: #{tpu_custom_call.1} parent=11 // pred_fallthru
          _
        // Predicated region
        $region17: #{tpu_custom_call.1} parent=11 // pred_check
          %p227 = pneg %p89
        $region18: #{tpu_custom_call.1} parent=11 // pred_check_branch
          %229 = sbr.rel (%p227) target = $region20
        $region19: #{tpu_custom_call.1} parent=11 // pred_region
          %s231 = ssub.s32 9216, 9216
          %232 = vsyncadd [#allocation7], %s231
          %s233 = sshll.u32 [#allocation8], 4
          %s234 = int_to_ptr.vmem [resolvable:$true] %s233
          %239 = dma.hbm_to_vmem [thread:$0]  %s2, 9216, %s234, [#allocation7], 64, 64, 4
        $region20: #{tpu_custom_call.1} parent=11 // pred_fallthru
          _
        // Predicated region
        $region21: #{tpu_custom_call.1} parent=11 // pred_check
          %p240 = pneg %p110
        $region22: #{tpu_custom_call.1} parent=11 // pred_check_branch
          %242 = sbr.rel (%p240) target = $region24
        $region23: #{tpu_custom_call.1} parent=11 // pred_region
          %s244 = ssub.s32 1024, 1024
          %245 = vsyncadd [#allocation10], %s244
          %s246 = sshll.u32 [#allocation9], 4
          %s247 = int_to_ptr.vmem [resolvable:$true] %s246
          %252 = dma.hbm_to_vmem [thread:$0]  %s3, 1024, %s247, [#allocation10], 64, 64, 4
        $region24: #{tpu_custom_call.1} parent=11 // pred_fallthru
          _
        // Predicated region
        $region25: #{tpu_custom_call.1} parent=11 // pred_check
          %p253 = pneg %p131
        $region26: #{tpu_custom_call.1} parent=11 // pred_check_branch
          %255 = sbr.rel (%p253) target = $region28
        $region27: #{tpu_custom_call.1} parent=11 // pred_region
          _
        $region28: #{tpu_custom_call.1} parent=11 // pred_fallthru
          _
        // Predicated region
        $region29: #{tpu_custom_call.1} parent=11 // pred_check
          %p256 = pneg %p152
        $region30: #{tpu_custom_call.1} parent=11 // pred_check_branch
          %258 = sbr.rel (%p256) target = $region32
        $region31: #{tpu_custom_call.1} parent=11 // pred_region
          _
        $region32: #{tpu_custom_call.1} parent=11 // pred_fallthru
          _
        // Predicated region
        $region33: #{tpu_custom_call.1} parent=11 // pred_check
          %p259 = pneg %p173
        $region34: #{tpu_custom_call.1} parent=11 // pred_check_branch
          %261 = sbr.rel (%p259) target = $region36
        $region35: #{tpu_custom_call.1} parent=11 // pred_region
          _
        $region36: #{tpu_custom_call.1} parent=11 // pred_fallthru
          _
      $region12: #{tpu_custom_call.1} parent=5 // pred_fallthru
        _
      %p262 = scmp.lt.s32.totalorder %s21, 2
      // Predicated region
      $region37: #{tpu_custom_call.1} parent=5 // pred_check
        %p263 = pneg %p262
      $region38: #{tpu_custom_call.1} parent=5 // pred_check_branch
        %265 = sbr.rel (%p263) target = $region40
      $region39: #{tpu_custom_call.1} parent=5 // pred_region
        // Predicated region
        $region41: #{tpu_custom_call.1} parent=39 // pred_check
          %p266 = pneg %p41
        $region42: #{tpu_custom_call.1} parent=39 // pred_check_branch
          %268 = sbr.rel (%p266) target = $region44
        $region43: #{tpu_custom_call.1} parent=39 // pred_region
          %s269 = sand.u32 %s31, 1
          %s270 = scalar_lea.sflag [#allocation4], %s269
          %s271 = sand.u32 %s31, 1
          %s272 = smul.addr %s271, 64
          %s273 = scalar_lea.vmem [#allocation3], %s272
          %s275 = ssub.s32 1024, 1024
          %276 = vsyncadd %s270, %s275
          %s277 = smul.addr %s21, 8
          %s278 = smul.addr %s277, 128
          %s279 = scalar_lea.hbm %s0, %s278
          %s280 = sshll.u32 %s273, 4
          %s281 = int_to_ptr.vmem [resolvable:$true] %s280
          %286 = dma.hbm_to_vmem [thread:$0]  %s279, 1024, %s281, %s270, 128, 128, 8
        $region44: #{tpu_custom_call.1} parent=39 // pred_fallthru
          _
      $region40: #{tpu_custom_call.1} parent=5 // pred_fallthru
        _
      %p287 = scmp.le.s32.totalorder 1, %s21
      %p288 = scmp.lt.s32.totalorder %s21, 3
      %p289 = pnand %p287, %p288
      %p290 = pneg %p289
      // Predicated region
      $region45: #{tpu_custom_call.1} parent=5 // pred_check
        _
      $region46: #{tpu_custom_call.1} parent=5 // pred_check_branch
        %292 = sbr.rel (%p289) target = $region48
      $region47: #{tpu_custom_call.1} parent=5 // pred_region
        %s293 = ssub.s32 %s21, 1
        %s294 = sand.u32 %s34, 1
        %s295 = scalar_lea.sflag [#allocation4], %s294
        %s296 = sand.u32 %s34, 1
        %s297 = smul.addr %s296, 64
        %s298 = scalar_lea.vmem [#allocation3], %s297
        // Predicated region
        $region49: #{tpu_custom_call.1} parent=47 // pred_check
          %p299 = pneg %p47
        $region50: #{tpu_custom_call.1} parent=47 // pred_check_branch
          %301 = sbr.rel (%p299) target = $region52
        $region51: #{tpu_custom_call.1} parent=47 // pred_region
          %302 = dma.done %s295, 1024
        $region52: #{tpu_custom_call.1} parent=47 // pred_fallthru
          _
        // Predicated region
        $region53: #{tpu_custom_call.1} parent=47 // pred_check
          %p303 = pneg %p68
        $region54: #{tpu_custom_call.1} parent=47 // pred_check_branch
          %305 = sbr.rel (%p303) target = $region56
        $region55: #{tpu_custom_call.1} parent=47 // pred_region
          %306 = dma.done [#allocation7], 1024
        $region56: #{tpu_custom_call.1} parent=47 // pred_fallthru
          _
        // Predicated region
        $region57: #{tpu_custom_call.1} parent=47 // pred_check
          %p307 = pneg %p89
        $region58: #{tpu_custom_call.1} parent=47 // pred_check_branch
          %309 = sbr.rel (%p307) target = $region60
        $region59: #{tpu_custom_call.1} parent=47 // pred_region
          %310 = dma.done [#allocation7], 9216
        $region60: #{tpu_custom_call.1} parent=47 // pred_fallthru
          _
        // Predicated region
        $region61: #{tpu_custom_call.1} parent=47 // pred_check
          %p311 = pneg %p110
        $region62: #{tpu_custom_call.1} parent=47 // pred_check_branch
          %313 = sbr.rel (%p311) target = $region64
        $region63: #{tpu_custom_call.1} parent=47 // pred_region
          %314 = dma.done [#allocation10], 1024
        $region64: #{tpu_custom_call.1} parent=47 // pred_fallthru
          _
        %s315 = sand.u32 %s34, 1
        %s316 = scalar_lea.sflag [#allocation4], %s315
        %s317 = sand.u32 %s34, 1
        %s318 = smul.addr %s317, 64
        %s319 = scalar_lea.vmem [#allocation3], %s318
        %p320 = pneg %p47
        %p321 = pneg %p44
        %p322 = pneg %p68
        %p323 = pneg %p65
        %p324 = pneg %p89
        %p325 = pneg %p86
        %p326 = pneg %p110
        %p327 = pneg %p107
        %p328 = pneg %p131
        %p329 = pneg %p128
        %p330 = pneg %p152
        %p331 = pneg %p149
        %p332 = pneg %p173
        %p333 = pneg %p170
        %p334 = pneg %p199
        %p335 = pneg %p196
        %s336 = sand.u32 %s186, 1
        %s337 = scalar_lea.sflag [#allocation5], %s336
        %s338 = sand.u32 %s186, 1
        %s339 = smul.addr %s338, 64
        %s340 = scalar_lea.vmem [#allocation11], %s339
        %v342 = vld [vmem:[%s298] sm:$0xff]
        %v343 = vld [vmem:[%s298 + $0x8] sm:$0xff]
        %v344 = vld [vmem:[%s298 + $0x10] sm:$0xff]
        %v345 = vld [vmem:[%s298 + $0x18] sm:$0xff]
        %v346 = vld [vmem:[%s298 + $0x20] sm:$0xff]
        %v347 = vld [vmem:[%s298 + $0x28] sm:$0xff]
        %v348 = vld [vmem:[%s298 + $0x30] sm:$0xff]
        %v349 = vld [vmem:[%s298 + $0x38] sm:$0xff]
        %v350 = vpack.c.bf16 %v343, %v342
        %v351 = vpack.c.bf16 %v345, %v344
        %v352 = vpack.c.bf16 %v347, %v346
        %v353 = vpack.c.bf16 %v349, %v348
        %v354 = vld [vmem:[#allocation6] sm:$0xf]
        %v355 = vld [vmem:[#allocation6 + $0x4] sm:$0xf]
        %v356 = vld [vmem:[#allocation6 + $0x8] sm:$0xf]
        %v357 = vld [vmem:[#allocation6 + $0xc] sm:$0xf]
        %v358 = vld [vmem:[#allocation6 + $0x10] sm:$0xf]
        %v359 = vld [vmem:[#allocation6 + $0x14] sm:$0xf]
        %v360 = vld [vmem:[#allocation6 + $0x18] sm:$0xf]
        %v361 = vld [vmem:[#allocation6 + $0x1c] sm:$0xf]
        %v362 = vld [vmem:[#allocation6 + $0x20] sm:$0xf]
        %v363 = vld [vmem:[#allocation6 + $0x24] sm:$0xf]
        %v364 = vld [vmem:[#allocation6 + $0x28] sm:$0xf]
        %v365 = vld [vmem:[#allocation6 + $0x2c] sm:$0xf]
        %v366 = vld [vmem:[#allocation6 + $0x30] sm:$0xf]
        %v367 = vld [vmem:[#allocation6 + $0x34] sm:$0xf]
        %v368 = vld [vmem:[#allocation6 + $0x38] sm:$0xf]
        %v369 = vld [vmem:[#allocation6 + $0x3c] sm:$0xf]
        %v370 = vld [vmem:[%s4] sm:$0x1]
        %v372 = vlaneseq
        %v373 = vshrl.u32 %v372, 7
        %v374 = vsub.s32 0, %v373
        %v375 = vrot.slane %v370, %v374
        %v393 = vunpack.c.l.b16 %v354
        %v394 = vunpack.c.l.b16 %v355
        %v395 = vunpack.c.l.b16 %v356
        %v396 = vunpack.c.l.b16 %v357
        %v397 = vunpack.c.l.b16 %v358
        %v398 = vunpack.c.l.b16 %v359
        %v399 = vunpack.c.l.b16 %v360
        %v400 = vunpack.c.l.b16 %v361
        %v401 = vunpack.c.l.b16 %v362
        %v402 = vunpack.c.l.b16 %v363
        %v403 = vunpack.c.l.b16 %v364
        %v404 = vunpack.c.l.b16 %v365
        %v405 = vunpack.c.l.b16 %v366
        %v406 = vunpack.c.l.b16 %v367
        %v407 = vunpack.c.l.b16 %v368
        %v408 = vunpack.c.l.b16 %v369
        %v409 = vpack.c.b16 %v394, %v393
        %v410 = vpack.c.b16 %v396, %v395
        %v411 = vpack.c.b16 %v398, %v397
        %v412 = vpack.c.b16 %v400, %v399
        %v413 = vpack.c.b16 %v402, %v401
        %v414 = vpack.c.b16 %v404, %v403
        %v415 = vpack.c.b16 %v406, %v405
        %v416 = vpack.c.b16 %v408, %v407
        %425 = vmatprep.subr.bf16.mxu0 0
        %426 = vmatpush1.bf16.msra.mxu0 %v409
        %427 = vmatprep.subr.bf16.mxu0 0
        %428 = vmatpush1.bf16.msra.mxu0 %v410
        %429 = vmatprep.subr.bf16.mxu0 0
        %430 = vmatpush1.bf16.msra.mxu0 %v411
        %431 = vmatprep.subr.bf16.mxu0 0
        %432 = vmatpush1.bf16.msra.mxu0 %v412
        %433 = vmatprep.subr.bf16.mxu0 0
        %434 = vmatpush1.bf16.msra.mxu0 %v413
        %435 = vmatprep.subr.bf16.mxu0 0
        %436 = vmatpush1.bf16.msra.mxu0 %v414
        %437 = vmatprep.subr.bf16.mxu0 0
        %438 = vmatpush1.bf16.msra.mxu0 %v415
        %439 = vmatprep.subr.bf16.mxu0 0
        %440 = vmatpush1.bf16.msra.mxu0 %v416
        %441 = vmatprep.subr.bf16.mxu0 0
        %442 = vmatpush1.bf16.msra.mxu0 0
        %443 = vmatprep.subr.bf16.mxu0 0
        %444 = vmatpush1.bf16.msra.mxu0 0
        %445 = vmatprep.subr.bf16.mxu0 0
        %446 = vmatpush1.bf16.msra.mxu0 0
        %447 = vmatprep.subr.bf16.mxu0 0
        %448 = vmatpush1.bf16.msra.mxu0 0
        %449 = vmatprep.subr.bf16.mxu0 0
        %450 = vmatpush1.bf16.msra.mxu0 0
        %451 = vmatprep.subr.bf16.mxu0 0
        %452 = vmatpush1.bf16.msra.mxu0 0
        %453 = vmatprep.subr.bf16.mxu0 0
        %454 = vmatpush1.bf16.msra.mxu0 0
        %455 = vmatprep.subr.bf16.mxu0 0
        %456 = vmatpush1.bf16.msra.mxu0 0
        %457 = vmatprep.mubr.bf16.mxu0 0
        %458 = vmatmul.mubr.bf16.gmra.mrb[0].mxu0 %v350
        %v459 = vpop.f32.mrb[0].mxu0
        %v460 = vadd.f32 %v375, %v459
        %v461 = vpop.f32.mrb[0].mxu0
        %v462 = vpop.f32.mrb[0].mxu0
        %v463 = vadd.f32 %v375, %v462
        %v464 = vpop.f32.mrb[0].mxu0
        %465 = vmatprep.mubr.bf16.mxu0 0
        %466 = vmatmul.mubr.bf16.gmra.mrb[0].mxu0 %v351
        %v467 = vpop.f32.mrb[0].mxu0
        %v468 = vadd.f32 %v375, %v467
        %v469 = vpop.f32.mrb[0].mxu0
        %v470 = vpop.f32.mrb[0].mxu0
        %v471 = vadd.f32 %v375, %v470
        %v472 = vpop.f32.mrb[0].mxu0
        %473 = vmatprep.mubr.bf16.mxu0 0
        %474 = vmatmul.mubr.bf16.gmra.mrb[0].mxu0 %v352
        %v475 = vpop.f32.mrb[0].mxu0
        %v476 = vadd.f32 %v375, %v475
        %v477 = vpop.f32.mrb[0].mxu0
        %v478 = vpop.f32.mrb[0].mxu0
        %v479 = vadd.f32 %v375, %v478
        %v480 = vpop.f32.mrb[0].mxu0
        %481 = vmatprep.mubr.bf16.mxu0 0
        %482 = vmatmul.mubr.bf16.gmra.mrb[0].mxu0 %v353
        %v483 = vpop.f32.mrb[0].mxu0
        %v484 = vadd.f32 %v375, %v483
        %v485 = vpop.f32.mrb[0].mxu0
        %v486 = vpop.f32.mrb[0].mxu0
        %v487 = vadd.f32 %v375, %v486
        %v488 = vpop.f32.mrb[0].mxu0
        %489 = vdwg.mxu0
        %v490 = vmax.f32 %v460, 0.0
        %v491 = vmax.f32 %v463, 0.0
        %v492 = vmax.f32 %v468, 0.0
        %v493 = vmax.f32 %v471, 0.0
        %v494 = vmax.f32 %v476, 0.0
        %v495 = vmax.f32 %v479, 0.0
        %v496 = vmax.f32 %v484, 0.0
        %v497 = vmax.f32 %v487, 0.0
        %498 = vst [vmem:[#allocation2] sm:$0xf] 0
        %499 = vst [vmem:[#allocation2 + $0x4] sm:$0x1] 0
        %500 = vst [vmem:[#allocation2 + $0x8] sm:$0xf] 0
        %501 = vst [vmem:[#allocation2 + $0xc] sm:$0x1] 0
        %502 = vst [vmem:[#allocation2 + $0x10] sm:$0xf] 0
        %503 = vst [vmem:[#allocation2 + $0x14] sm:$0x1] 0
        %504 = vst [vmem:[#allocation2 + $0x18] sm:$0xf] 0
        %505 = vst [vmem:[#allocation2 + $0x1c] sm:$0x1] 0
        %506 = vst [vmem:[#allocation2 + $0x20] sm:$0xf] 0
        %507 = vst [vmem:[#allocation2 + $0x24] sm:$0x1] 0
        %508 = vst [vmem:[#allocation2 + $0x28] sm:$0xf] 0
        %509 = vst [vmem:[#allocation2 + $0x2c] sm:$0x1] 0
        %510 = vst [vmem:[#allocation2 + $0x30] sm:$0xf] 0
        %511 = vst [vmem:[#allocation2 + $0x34] sm:$0x1] 0
        %512 = vst [vmem:[#allocation2 + $0x38] sm:$0xf] 0
        %513 = vst [vmem:[#allocation2 + $0x3c] sm:$0x1] 0
        %514 = vst [vmem:[#allocation2 + $0x40] sm:$0xf] 0
        %515 = vst [vmem:[#allocation2 + $0x44] sm:$0x1] 0
        %516 = vst [vmem:[#allocation2 + $0x48] sm:$0xf] 0
        %517 = vst [vmem:[#allocation2 + $0x4c] sm:$0x1] 0
        %v518 = vpack.c.bf16 %v490, %v490
        %v519 = vpack.c.bf16 %v491, %v491
        %v520 = vpack.c.bf16 %v492, %v492
        %v521 = vpack.c.bf16 %v493, %v493
        %v522 = vpack.c.bf16 %v494, %v494
        %v523 = vpack.c.bf16 %v495, %v495
        %v524 = vpack.c.bf16 %v496, %v496
        %v525 = vpack.c.bf16 %v497, %v497
        %v534 = vunpack.c.l.b16 %v518
        %v535 = vunpack.c.l.b16 %v519
        %v536 = vunpack.c.l.b16 %v520
        %v537 = vunpack.c.l.b16 %v521
        %v538 = vunpack.c.l.b16 %v522
        %v539 = vunpack.c.l.b16 %v523
        %v540 = vunpack.c.l.b16 %v524
        %v541 = vunpack.c.l.b16 %v525
        %v542 = vpack.c.b16 %v534, %v534
        %v543 = vpack.c.b16 %v535, %v535
        %v544 = vpack.c.b16 %v536, %v536
        %v545 = vpack.c.b16 %v537, %v537
        %v546 = vpack.c.b16 %v538, %v538
        %v547 = vpack.c.b16 %v539, %v539
        %v548 = vpack.c.b16 %v540, %v540
        %v549 = vpack.c.b16 %v541, %v541
        %v551 = vshrl.u32 %v542, 16
        %v553 = vrot.slane %v551, 7
        %v554 = vshll.u32 %v542, 16
        %v556 = vor.u32 %v553, %v554
        %v557 = vrot.slane %v553, 4
        %v559 = vshrl.u32 %v543, 16
        %v561 = vrot.slane %v559, 7
        %v562 = vshll.u32 %v543, 16
        %v564 = vor.u32 %v561, %v562
        %v565 = vrot.slane %v561, 4
        %v567 = vshrl.u32 %v544, 16
        %v569 = vrot.slane %v567, 7
        %v570 = vshll.u32 %v544, 16
        %v572 = vor.u32 %v569, %v570
        %v573 = vrot.slane %v569, 4
        %v575 = vshrl.u32 %v545, 16
        %v577 = vrot.slane %v575, 7
        %v578 = vshll.u32 %v545, 16
        %v580 = vor.u32 %v577, %v578
        %v581 = vrot.slane %v577, 4
        %v583 = vshrl.u32 %v546, 16
        %v585 = vrot.slane %v583, 7
        %v586 = vshll.u32 %v546, 16
        %v588 = vor.u32 %v585, %v586
        %v589 = vrot.slane %v585, 4
        %v591 = vshrl.u32 %v547, 16
        %v593 = vrot.slane %v591, 7
        %v594 = vshll.u32 %v547, 16
        %v596 = vor.u32 %v593, %v594
        %v597 = vrot.slane %v593, 4
        %v599 = vshrl.u32 %v548, 16
        %v601 = vrot.slane %v599, 7
        %v602 = vshll.u32 %v548, 16
        %v604 = vor.u32 %v601, %v602
        %v605 = vrot.slane %v601, 4
        %v607 = vshrl.u32 %v549, 16
        %v609 = vrot.slane %v607, 7
        %v610 = vshll.u32 %v549, 16
        %v612 = vor.u32 %v609, %v610
        %v613 = vrot.slane %v609, 4
        %s630 = scalar_lea.vmem [#allocation2], 8
        %vm631 = vcmask 1043456
        %vm632 = vsmask.f32 7938
        %vm633 = vmand %vm631, %vm632
        %v634 = vld [vmem:[%s630] sm:$0xf]
        %v635 = vsel %vm633, %v556, %v634
        %636 = vst [vmem:[%s630] sm:$0xf] %v635
        %vm637 = vcmask 1040384
        %vm638 = vsmask.f32 256
        %vm639 = vmand %vm637, %vm638
        %v640 = vld [vmem:[%s630 + $0x4] sm:$0x1]
        %v641 = vsel %vm639, %v557, %v640
        %642 = vst [vmem:[%s630 + $0x4] sm:$0x1] %v641
        %v643 = vld [vmem:[%s630 + $0x8] sm:$0xf]
        %v644 = vsel %vm633, %v564, %v643
        %645 = vst [vmem:[%s630 + $0x8] sm:$0xf] %v644
        %v646 = vld [vmem:[%s630 + $0xc] sm:$0x1]
        %v647 = vsel %vm639, %v565, %v646
        %648 = vst [vmem:[%s630 + $0xc] sm:$0x1] %v647
        %v649 = vld [vmem:[%s630 + $0x10] sm:$0xf]
        %v650 = vsel %vm633, %v572, %v649
        %651 = vst [vmem:[%s630 + $0x10] sm:$0xf] %v650
        %v652 = vld [vmem:[%s630 + $0x14] sm:$0x1]
        %v653 = vsel %vm639, %v573, %v652
        %654 = vst [vmem:[%s630 + $0x14] sm:$0x1] %v653
        %v655 = vld [vmem:[%s630 + $0x18] sm:$0xf]
        %v656 = vsel %vm633, %v580, %v655
        %657 = vst [vmem:[%s630 + $0x18] sm:$0xf] %v656
        %v658 = vld [vmem:[%s630 + $0x1c] sm:$0x1]
        %v659 = vsel %vm639, %v581, %v658
        %660 = vst [vmem:[%s630 + $0x1c] sm:$0x1] %v659
        %v661 = vld [vmem:[%s630 + $0x20] sm:$0xf]
        %v662 = vsel %vm633, %v588, %v661
        %663 = vst [vmem:[%s630 + $0x20] sm:$0xf] %v662
        %v664 = vld [vmem:[%s630 + $0x24] sm:$0x1]
        %v665 = vsel %vm639, %v589, %v664
        %666 = vst [vmem:[%s630 + $0x24] sm:$0x1] %v665
        %v667 = vld [vmem:[%s630 + $0x28] sm:$0xf]
        %v668 = vsel %vm633, %v596, %v667
        %669 = vst [vmem:[%s630 + $0x28] sm:$0xf] %v668
        %v670 = vld [vmem:[%s630 + $0x2c] sm:$0x1]
        %v671 = vsel %vm639, %v597, %v670
        %672 = vst [vmem:[%s630 + $0x2c] sm:$0x1] %v671
        %v673 = vld [vmem:[%s630 + $0x30] sm:$0xf]
        %v674 = vsel %vm633, %v604, %v673
        %675 = vst [vmem:[%s630 + $0x30] sm:$0xf] %v674
        %v676 = vld [vmem:[%s630 + $0x34] sm:$0x1]
        %v677 = vsel %vm639, %v605, %v676
        %678 = vst [vmem:[%s630 + $0x34] sm:$0x1] %v677
        %v679 = vld [vmem:[%s630 + $0x38] sm:$0xf]
        %v680 = vsel %vm633, %v612, %v679
        %681 = vst [vmem:[%s630 + $0x38] sm:$0xf] %v680
        %v682 = vld [vmem:[%s630 + $0x3c] sm:$0x1]
        %v683 = vsel %vm639, %v613, %v682
        %684 = vst [vmem:[%s630 + $0x3c] sm:$0x1] %v683
        %v685 = vld [vmem:[#allocation2] sm:$0xf]
        %v686 = vld [vmem:[#allocation2 + $0x8] sm:$0xf]
        %v687 = vld [vmem:[#allocation2 + $0x10] sm:$0xf]
        %v688 = vld [vmem:[#allocation2 + $0x18] sm:$0xf]
        %v689 = vld [vmem:[#allocation2 + $0x20] sm:$0xf]
        %v690 = vld [vmem:[#allocation2 + $0x28] sm:$0xf]
        %v691 = vld [vmem:[#allocation2 + $0x30] sm:$0xf]
        %v692 = vld [vmem:[#allocation2 + $0x38] sm:$0xf]
        %v693 = vld [vmem:[#allocation2 + $0x4] sm:$0x1]
        %v694 = vld [vmem:[#allocation2 + $0xc] sm:$0x1]
        %v695 = vld [vmem:[#allocation2 + $0x14] sm:$0x1]
        %v696 = vld [vmem:[#allocation2 + $0x1c] sm:$0x1]
        %v697 = vld [vmem:[#allocation2 + $0x24] sm:$0x1]
        %v698 = vld [vmem:[#allocation2 + $0x2c] sm:$0x1]
        %v699 = vld [vmem:[#allocation2 + $0x34] sm:$0x1]
        %v700 = vld [vmem:[#allocation2 + $0x3c] sm:$0x1]
        %v701 = vld [vmem:[#allocation2] sm:$0xe]
        %v702 = vld [vmem:[#allocation2 + $0x8] sm:$0xe]
        %v703 = vld [vmem:[#allocation2 + $0x10] sm:$0xe]
        %v704 = vld [vmem:[#allocation2 + $0x18] sm:$0xe]
        %v705 = vld [vmem:[#allocation2 + $0x20] sm:$0xe]
        %v706 = vld [vmem:[#allocation2 + $0x28] sm:$0xe]
        %v707 = vld [vmem:[#allocation2 + $0x30] sm:$0xe]
        %v708 = vld [vmem:[#allocation2 + $0x38] sm:$0xe]
        %v709 = vld [vmem:[%s630] sm:$0xf]
        %v710 = vld [vmem:[%s630 + $0x8] sm:$0xf]
        %v711 = vld [vmem:[%s630 + $0x10] sm:$0xf]
        %v712 = vld [vmem:[%s630 + $0x18] sm:$0xf]
        %v713 = vld [vmem:[%s630 + $0x20] sm:$0xf]
        %v714 = vld [vmem:[%s630 + $0x28] sm:$0xf]
        %v715 = vld [vmem:[%s630 + $0x30] sm:$0xf]
        %v716 = vld [vmem:[%s630 + $0x38] sm:$0xf]
        %v717 = vld [vmem:[%s630 + $0x4] sm:$0x1]
        %v718 = vld [vmem:[%s630 + $0xc] sm:$0x1]
        %v719 = vld [vmem:[%s630 + $0x14] sm:$0x1]
        %v720 = vld [vmem:[%s630 + $0x1c] sm:$0x1]
        %v721 = vld [vmem:[%s630 + $0x24] sm:$0x1]
        %v722 = vld [vmem:[%s630 + $0x2c] sm:$0x1]
        %v723 = vld [vmem:[%s630 + $0x34] sm:$0x1]
        %v724 = vld [vmem:[%s630 + $0x3c] sm:$0x1]
        %v725 = vld [vmem:[%s630] sm:$0xe]
        %v726 = vld [vmem:[%s630 + $0x8] sm:$0xe]
        %v727 = vld [vmem:[%s630 + $0x10] sm:$0xe]
        %v728 = vld [vmem:[%s630 + $0x18] sm:$0xe]
        %v729 = vld [vmem:[%s630 + $0x20] sm:$0xe]
        %v730 = vld [vmem:[%s630 + $0x28] sm:$0xe]
        %v731 = vld [vmem:[%s630 + $0x30] sm:$0xe]
        %v732 = vld [vmem:[%s630 + $0x38] sm:$0xe]
        %s733 = scalar_lea.vmem [#allocation2], 16
        %v734 = vld [vmem:[%s733] sm:$0xf]
        %v735 = vld [vmem:[%s733 + $0x8] sm:$0xf]
        %v736 = vld [vmem:[%s733 + $0x10] sm:$0xf]
        %v737 = vld [vmem:[%s733 + $0x18] sm:$0xf]
        %v738 = vld [vmem:[%s733 + $0x20] sm:$0xf]
        %v739 = vld [vmem:[%s733 + $0x28] sm:$0xf]
        %v740 = vld [vmem:[%s733 + $0x30] sm:$0xf]
        %v741 = vld [vmem:[%s733 + $0x38] sm:$0xf]
        %v742 = vld [vmem:[%s733 + $0x4] sm:$0x1]
        %v743 = vld [vmem:[%s733 + $0xc] sm:$0x1]
        %v744 = vld [vmem:[%s733 + $0x14] sm:$0x1]
        %v745 = vld [vmem:[%s733 + $0x1c] sm:$0x1]
        %v746 = vld [vmem:[%s733 + $0x24] sm:$0x1]
        %v747 = vld [vmem:[%s733 + $0x2c] sm:$0x1]
        %v748 = vld [vmem:[%s733 + $0x34] sm:$0x1]
        %v749 = vld [vmem:[%s733 + $0x3c] sm:$0x1]
        %v750 = vld [vmem:[%s733] sm:$0xe]
        %v751 = vld [vmem:[%s733 + $0x8] sm:$0xe]
        %v752 = vld [vmem:[%s733 + $0x10] sm:$0xe]
        %v753 = vld [vmem:[%s733 + $0x18] sm:$0xe]
        %v754 = vld [vmem:[%s733 + $0x20] sm:$0xe]
        %v755 = vld [vmem:[%s733 + $0x28] sm:$0xe]
        %v756 = vld [vmem:[%s733 + $0x30] sm:$0xe]
        %v757 = vld [vmem:[%s733 + $0x38] sm:$0xe]
        %v774 = vunpack.c.l.b16 %v685
        %v775 = vunpack.c.l.b16 %v693
        %v776 = vunpack.c.l.b16 %v686
        %v777 = vunpack.c.l.b16 %v694
        %v778 = vunpack.c.l.b16 %v687
        %v779 = vunpack.c.l.b16 %v695
        %v780 = vunpack.c.l.b16 %v688
        %v781 = vunpack.c.l.b16 %v696
        %v782 = vunpack.c.l.b16 %v689
        %v783 = vunpack.c.l.b16 %v697
        %v784 = vunpack.c.l.b16 %v690
        %v785 = vunpack.c.l.b16 %v698
        %v786 = vunpack.c.l.b16 %v691
        %v787 = vunpack.c.l.b16 %v699
        %v788 = vunpack.c.l.b16 %v692
        %v789 = vunpack.c.l.b16 %v700
        %v790 = vpack.c.b16 %v775, %v774
        %v791 = vpack.c.b16 %v777, %v776
        %v792 = vpack.c.b16 %v779, %v778
        %v793 = vpack.c.b16 %v781, %v780
        %v794 = vpack.c.b16 %v783, %v782
        %v795 = vpack.c.b16 %v785, %v784
        %v796 = vpack.c.b16 %v787, %v786
        %v797 = vpack.c.b16 %v789, %v788
        %v799 = vshrl.u32 %v790, 16
        %v801 = vshll.u32 %v790, 16
        %v803 = vrot.slane %v801, 1
        %v804 = vor.u32 %v799, %v803
        %v806 = vshrl.u32 %v791, 16
        %v808 = vshll.u32 %v791, 16
        %v810 = vrot.slane %v808, 1
        %v811 = vor.u32 %v806, %v810
        %v813 = vshrl.u32 %v792, 16
        %v815 = vshll.u32 %v792, 16
        %v817 = vrot.slane %v815, 1
        %v818 = vor.u32 %v813, %v817
        %v820 = vshrl.u32 %v793, 16
        %v822 = vshll.u32 %v793, 16
        %v824 = vrot.slane %v822, 1
        %v825 = vor.u32 %v820, %v824
        %v827 = vshrl.u32 %v794, 16
        %v829 = vshll.u32 %v794, 16
        %v831 = vrot.slane %v829, 1
        %v832 = vor.u32 %v827, %v831
        %v834 = vshrl.u32 %v795, 16
        %v836 = vshll.u32 %v795, 16
        %v838 = vrot.slane %v836, 1
        %v839 = vor.u32 %v834, %v838
        %v841 = vshrl.u32 %v796, 16
        %v843 = vshll.u32 %v796, 16
        %v845 = vrot.slane %v843, 1
        %v846 = vor.u32 %v841, %v845
        %v848 = vshrl.u32 %v797, 16
        %v850 = vshll.u32 %v797, 16
        %v852 = vrot.slane %v850, 1
        %v853 = vor.u32 %v848, %v852
        %v862 = vunpack.c.l.b16 %v701
        %v863 = vunpack.c.l.b16 %v702
        %v864 = vunpack.c.l.b16 %v703
        %v865 = vunpack.c.l.b16 %v704
        %v866 = vunpack.c.l.b16 %v705
        %v867 = vunpack.c.l.b16 %v706
        %v868 = vunpack.c.l.b16 %v707
        %v869 = vunpack.c.l.b16 %v708
        %v870 = vpack.c.b16 %v775, %v862
        %v871 = vpack.c.b16 %v777, %v863
        %v872 = vpack.c.b16 %v779, %v864
        %v873 = vpack.c.b16 %v781, %v865
        %v874 = vpack.c.b16 %v783, %v866
        %v875 = vpack.c.b16 %v785, %v867
        %v876 = vpack.c.b16 %v787, %v868
        %v877 = vpack.c.b16 %v789, %v869
        %v878 = vrot.slane %v870, 1
        %v879 = vrot.slane %v871, 1
        %v880 = vrot.slane %v872, 1
        %v881 = vrot.slane %v873, 1
        %v882 = vrot.slane %v874, 1
        %v883 = vrot.slane %v875, 1
        %v884 = vrot.slane %v876, 1
        %v885 = vrot.slane %v877, 1
        %v902 = vunpack.c.l.b16 %v709
        %v903 = vunpack.c.l.b16 %v717
        %v904 = vunpack.c.l.b16 %v710
        %v905 = vunpack.c.l.b16 %v718
        %v906 = vunpack.c.l.b16 %v711
        %v907 = vunpack.c.l.b16 %v719
        %v908 = vunpack.c.l.b16 %v712
        %v909 = vunpack.c.l.b16 %v720
        %v910 = vunpack.c.l.b16 %v713
        %v911 = vunpack.c.l.b16 %v721
        %v912 = vunpack.c.l.b16 %v714
        %v913 = vunpack.c.l.b16 %v722
        %v914 = vunpack.c.l.b16 %v715
        %v915 = vunpack.c.l.b16 %v723
        %v916 = vunpack.c.l.b16 %v716
        %v917 = vunpack.c.l.b16 %v724
        %v918 = vpack.c.b16 %v903, %v902
        %v919 = vpack.c.b16 %v905, %v904
        %v920 = vpack.c.b16 %v907, %v906
        %v921 = vpack.c.b16 %v909, %v908
        %v922 = vpack.c.b16 %v911, %v910
        %v923 = vpack.c.b16 %v913, %v912
        %v924 = vpack.c.b16 %v915, %v914
        %v925 = vpack.c.b16 %v917, %v916
        %v927 = vshrl.u32 %v918, 16
        %v929 = vshll.u32 %v918, 16
        %v931 = vrot.slane %v929, 1
        %v932 = vor.u32 %v927, %v931
        %v934 = vshrl.u32 %v919, 16
        %v936 = vshll.u32 %v919, 16
        %v938 = vrot.slane %v936, 1
        %v939 = vor.u32 %v934, %v938
        %v941 = vshrl.u32 %v920, 16
        %v943 = vshll.u32 %v920, 16
        %v945 = vrot.slane %v943, 1
        %v946 = vor.u32 %v941, %v945
        %v948 = vshrl.u32 %v921, 16
        %v950 = vshll.u32 %v921, 16
        %v952 = vrot.slane %v950, 1
        %v953 = vor.u32 %v948, %v952
        %v955 = vshrl.u32 %v922, 16
        %v957 = vshll.u32 %v922, 16
        %v959 = vrot.slane %v957, 1
        %v960 = vor.u32 %v955, %v959
        %v962 = vshrl.u32 %v923, 16
        %v964 = vshll.u32 %v923, 16
        %v966 = vrot.slane %v964, 1
        %v967 = vor.u32 %v962, %v966
        %v969 = vshrl.u32 %v924, 16
        %v971 = vshll.u32 %v924, 16
        %v973 = vrot.slane %v971, 1
        %v974 = vor.u32 %v969, %v973
        %v976 = vshrl.u32 %v925, 16
        %v978 = vshll.u32 %v925, 16
        %v980 = vrot.slane %v978, 1
        %v981 = vor.u32 %v976, %v980
        %v990 = vunpack.c.l.b16 %v725
        %v991 = vunpack.c.l.b16 %v726
        %v992 = vunpack.c.l.b16 %v727
        %v993 = vunpack.c.l.b16 %v728
        %v994 = vunpack.c.l.b16 %v729
        %v995 = vunpack.c.l.b16 %v730
        %v996 = vunpack.c.l.b16 %v731
        %v997 = vunpack.c.l.b16 %v732
        %v998 = vpack.c.b16 %v903, %v990
        %v999 = vpack.c.b16 %v905, %v991
        %v1000 = vpack.c.b16 %v907, %v992
        %v1001 = vpack.c.b16 %v909, %v993
        %v1002 = vpack.c.b16 %v911, %v994
        %v1003 = vpack.c.b16 %v913, %v995
        %v1004 = vpack.c.b16 %v915, %v996
        %v1005 = vpack.c.b16 %v917, %v997
        %v1006 = vrot.slane %v998, 1
        %v1007 = vrot.slane %v999, 1
        %v1008 = vrot.slane %v1000, 1
        %v1009 = vrot.slane %v1001, 1
        %v1010 = vrot.slane %v1002, 1
        %v1011 = vrot.slane %v1003, 1
        %v1012 = vrot.slane %v1004, 1
        %v1013 = vrot.slane %v1005, 1
        %v1030 = vunpack.c.l.b16 %v734
        %v1031 = vunpack.c.l.b16 %v742
        %v1032 = vunpack.c.l.b16 %v735
        %v1033 = vunpack.c.l.b16 %v743
        %v1034 = vunpack.c.l.b16 %v736
        %v1035 = vunpack.c.l.b16 %v744
        %v1036 = vunpack.c.l.b16 %v737
        %v1037 = vunpack.c.l.b16 %v745
        %v1038 = vunpack.c.l.b16 %v738
        %v1039 = vunpack.c.l.b16 %v746
        %v1040 = vunpack.c.l.b16 %v739
        %v1041 = vunpack.c.l.b16 %v747
        %v1042 = vunpack.c.l.b16 %v740
        %v1043 = vunpack.c.l.b16 %v748
        %v1044 = vunpack.c.l.b16 %v741
        %v1045 = vunpack.c.l.b16 %v749
        %v1046 = vpack.c.b16 %v1031, %v1030
        %v1047 = vpack.c.b16 %v1033, %v1032
        %v1048 = vpack.c.b16 %v1035, %v1034
        %v1049 = vpack.c.b16 %v1037, %v1036
        %v1050 = vpack.c.b16 %v1039, %v1038
        %v1051 = vpack.c.b16 %v1041, %v1040
        %v1052 = vpack.c.b16 %v1043, %v1042
        %v1053 = vpack.c.b16 %v1045, %v1044
        %v1055 = vshrl.u32 %v1046, 16
        %v1057 = vshll.u32 %v1046, 16
        %v1059 = vrot.slane %v1057, 1
        %v1060 = vor.u32 %v1055, %v1059
        %v1062 = vshrl.u32 %v1047, 16
        %v1064 = vshll.u32 %v1047, 16
        %v1066 = vrot.slane %v1064, 1
        %v1067 = vor.u32 %v1062, %v1066
        %v1069 = vshrl.u32 %v1048, 16
        %v1071 = vshll.u32 %v1048, 16
        %v1073 = vrot.slane %v1071, 1
        %v1074 = vor.u32 %v1069, %v1073
        %v1076 = vshrl.u32 %v1049, 16
        %v1078 = vshll.u32 %v1049, 16
        %v1080 = vrot.slane %v1078, 1
        %v1081 = vor.u32 %v1076, %v1080
        %v1083 = vshrl.u32 %v1050, 16
        %v1085 = vshll.u32 %v1050, 16
        %v1087 = vrot.slane %v1085, 1
        %v1088 = vor.u32 %v1083, %v1087
        %v1090 = vshrl.u32 %v1051, 16
        %v1092 = vshll.u32 %v1051, 16
        %v1094 = vrot.slane %v1092, 1
        %v1095 = vor.u32 %v1090, %v1094
        %v1097 = vshrl.u32 %v1052, 16
        %v1099 = vshll.u32 %v1052, 16
        %v1101 = vrot.slane %v1099, 1
        %v1102 = vor.u32 %v1097, %v1101
        %v1104 = vshrl.u32 %v1053, 16
        %v1106 = vshll.u32 %v1053, 16
        %v1108 = vrot.slane %v1106, 1
        %v1109 = vor.u32 %v1104, %v1108
        %v1118 = vunpack.c.l.b16 %v750
        %v1119 = vunpack.c.l.b16 %v751
        %v1120 = vunpack.c.l.b16 %v752
        %v1121 = vunpack.c.l.b16 %v753
        %v1122 = vunpack.c.l.b16 %v754
        %v1123 = vunpack.c.l.b16 %v755
        %v1124 = vunpack.c.l.b16 %v756
        %v1125 = vunpack.c.l.b16 %v757
        %v1126 = vpack.c.b16 %v1031, %v1118
        %v1127 = vpack.c.b16 %v1033, %v1119
        %v1128 = vpack.c.b16 %v1035, %v1120
        %v1129 = vpack.c.b16 %v1037, %v1121
        %v1130 = vpack.c.b16 %v1039, %v1122
        %v1131 = vpack.c.b16 %v1041, %v1123
        %v1132 = vpack.c.b16 %v1043, %v1124
        %v1133 = vpack.c.b16 %v1045, %v1125
        %v1134 = vrot.slane %v1126, 1
        %v1135 = vrot.slane %v1127, 1
        %v1136 = vrot.slane %v1128, 1
        %v1137 = vrot.slane %v1129, 1
        %v1138 = vrot.slane %v1130, 1
        %v1139 = vrot.slane %v1131, 1
        %v1140 = vrot.slane %v1132, 1
        %v1141 = vrot.slane %v1133, 1
        %v1142 = vunpack.c.l.b16 %v804
        %v1143 = vunpack.c.l.b16 %v878
        %v1144 = vunpack.c.l.b16 %v932
        %v1145 = vunpack.c.l.b16 %v1006
        %v1146 = vunpack.c.l.b16 %v1060
        %v1147 = vunpack.c.l.b16 %v1134
        %v1148 = vunpack.c.l.b16 %v811
        %v1149 = vunpack.c.l.b16 %v879
        %v1150 = vunpack.c.l.b16 %v939
        %v1151 = vunpack.c.l.b16 %v1007
        %v1152 = vunpack.c.l.b16 %v1067
        %v1153 = vunpack.c.l.b16 %v1135
        %v1154 = vunpack.c.l.b16 %v818
        %v1155 = vunpack.c.l.b16 %v880
        %v1156 = vunpack.c.l.b16 %v946
        %v1157 = vunpack.c.l.b16 %v1008
        %v1158 = vunpack.c.l.b16 %v1074
        %v1159 = vunpack.c.l.b16 %v1136
        %v1160 = vunpack.c.l.b16 %v825
        %v1161 = vunpack.c.l.b16 %v881
        %v1162 = vunpack.c.l.b16 %v953
        %v1163 = vunpack.c.l.b16 %v1009
        %v1164 = vunpack.c.l.b16 %v1081
        %v1165 = vunpack.c.l.b16 %v1137
        %v1166 = vunpack.c.l.b16 %v832
        %v1167 = vunpack.c.l.b16 %v882
        %v1168 = vunpack.c.l.b16 %v960
        %v1169 = vunpack.c.l.b16 %v1010
        %v1170 = vunpack.c.l.b16 %v1088
        %v1171 = vunpack.c.l.b16 %v1138
        %v1172 = vunpack.c.l.b16 %v839
        %v1173 = vunpack.c.l.b16 %v883
        %v1174 = vunpack.c.l.b16 %v967
        %v1175 = vunpack.c.l.b16 %v1011
        %v1176 = vunpack.c.l.b16 %v1095
        %v1177 = vunpack.c.l.b16 %v1139
        %v1178 = vunpack.c.l.b16 %v846
        %v1179 = vunpack.c.l.b16 %v884
        %v1180 = vunpack.c.l.b16 %v974
        %v1181 = vunpack.c.l.b16 %v1012
        %v1182 = vunpack.c.l.b16 %v1102
        %v1183 = vunpack.c.l.b16 %v1140
        %v1184 = vunpack.c.l.b16 %v853
        %v1185 = vunpack.c.l.b16 %v885
        %v1186 = vunpack.c.l.b16 %v981
        %v1187 = vunpack.c.l.b16 %v1013
        %v1188 = vunpack.c.l.b16 %v1109
        %v1189 = vunpack.c.l.b16 %v1141
        %v1190 = vld [vmem:[#allocation8] sm:$0xf]
        %v1191 = vld [vmem:[#allocation8 + $0x4] sm:$0xf]
        %v1192 = vld [vmem:[#allocation8 + $0x8] sm:$0xf]
        %v1193 = vld [vmem:[#allocation8 + $0xc] sm:$0xf]
        %v1194 = vld [vmem:[#allocation8 + $0x10] sm:$0xf]
        %v1195 = vld [vmem:[#allocation8 + $0x14] sm:$0xf]
        %v1196 = vld [vmem:[#allocation8 + $0x18] sm:$0xf]
        %v1197 = vld [vmem:[#allocation8 + $0x1c] sm:$0xf]
        %v1198 = vld [vmem:[#allocation8 + $0x20] sm:$0xf]
        %v1199 = vld [vmem:[#allocation8 + $0x24] sm:$0xf]
        %v1200 = vld [vmem:[#allocation8 + $0x28] sm:$0xf]
        %v1201 = vld [vmem:[#allocation8 + $0x2c] sm:$0xf]
        %v1202 = vld [vmem:[#allocation8 + $0x30] sm:$0xf]
        %v1203 = vld [vmem:[#allocation8 + $0x34] sm:$0xf]
        %v1204 = vld [vmem:[#allocation8 + $0x38] sm:$0xf]
        %v1205 = vld [vmem:[#allocation8 + $0x3c] sm:$0xf]
        %v1206 = vld [vmem:[#allocation8 + $0x40] sm:$0xf]
        %v1207 = vld [vmem:[#allocation8 + $0x44] sm:$0xf]
        %v1208 = vld [vmem:[#allocation8 + $0x48] sm:$0xf]
        %v1209 = vld [vmem:[#allocation8 + $0x4c] sm:$0xf]
        %v1210 = vld [vmem:[#allocation8 + $0x50] sm:$0xf]
        %v1211 = vld [vmem:[#allocation8 + $0x54] sm:$0xf]
        %v1212 = vld [vmem:[#allocation8 + $0x58] sm:$0xf]
        %v1213 = vld [vmem:[#allocation8 + $0x5c] sm:$0xf]
        %v1214 = vld [vmem:[#allocation8 + $0x60] sm:$0xf]
        %v1215 = vld [vmem:[#allocation8 + $0x64] sm:$0xf]
        %v1216 = vld [vmem:[#allocation8 + $0x68] sm:$0xf]
        %v1217 = vld [vmem:[#allocation8 + $0x6c] sm:$0xf]
        %v1218 = vld [vmem:[#allocation8 + $0x70] sm:$0xf]
        %v1219 = vld [vmem:[#allocation8 + $0x74] sm:$0xf]
        %v1220 = vld [vmem:[#allocation8 + $0x78] sm:$0xf]
        %v1221 = vld [vmem:[#allocation8 + $0x7c] sm:$0xf]
        %v1222 = vld [vmem:[#allocation8 + $0x80] sm:$0xf]
        %v1223 = vld [vmem:[#allocation8 + $0x84] sm:$0xf]
        %v1224 = vld [vmem:[#allocation8 + $0x88] sm:$0xf]
        %v1225 = vld [vmem:[#allocation8 + $0x8c] sm:$0xf]
        %v1226 = vld [vmem:[#allocation8 + $0x90] sm:$0xf]
        %v1227 = vld [vmem:[#allocation8 + $0x94] sm:$0xf]
        %v1228 = vld [vmem:[#allocation8 + $0x98] sm:$0xf]
        %v1229 = vld [vmem:[#allocation8 + $0x9c] sm:$0xf]
        %v1230 = vld [vmem:[#allocation8 + $0xa0] sm:$0xf]
        %v1231 = vld [vmem:[#allocation8 + $0xa4] sm:$0xf]
        %v1232 = vld [vmem:[#allocation8 + $0xa8] sm:$0xf]
        %v1233 = vld [vmem:[#allocation8 + $0xac] sm:$0xf]
        %v1234 = vld [vmem:[#allocation8 + $0xb0] sm:$0xf]
        %v1235 = vld [vmem:[#allocation8 + $0xb4] sm:$0xf]
        %v1236 = vld [vmem:[#allocation8 + $0xb8] sm:$0xf]
        %v1237 = vld [vmem:[#allocation8 + $0xbc] sm:$0xf]
        %v1238 = vld [vmem:[#allocation8 + $0xc0] sm:$0xf]
        %v1239 = vld [vmem:[#allocation8 + $0xc4] sm:$0xf]
        %v1240 = vld [vmem:[#allocation8 + $0xc8] sm:$0xf]
        %v1241 = vld [vmem:[#allocation8 + $0xcc] sm:$0xf]
        %v1242 = vld [vmem:[#allocation8 + $0xd0] sm:$0xf]
        %v1243 = vld [vmem:[#allocation8 + $0xd4] sm:$0xf]
        %v1244 = vld [vmem:[#allocation8 + $0xd8] sm:$0xf]
        %v1245 = vld [vmem:[#allocation8 + $0xdc] sm:$0xf]
        %v1246 = vld [vmem:[#allocation8 + $0xe0] sm:$0xf]
        %v1247 = vld [vmem:[#allocation8 + $0xe4] sm:$0xf]
        %v1248 = vld [vmem:[#allocation8 + $0xe8] sm:$0xf]
        %v1249 = vld [vmem:[#allocation8 + $0xec] sm:$0xf]
        %v1250 = vld [vmem:[#allocation8 + $0xf0] sm:$0xf]
        %v1251 = vld [vmem:[#allocation8 + $0xf4] sm:$0xf]
        %v1252 = vld [vmem:[#allocation8 + $0xf8] sm:$0xf]
        %v1253 = vld [vmem:[#allocation8 + $0xfc] sm:$0xf]
        %v1254 = vld [vmem:[#allocation8 + $0x100] sm:$0xf]
        %v1255 = vld [vmem:[#allocation8 + $0x104] sm:$0xf]
        %v1256 = vld [vmem:[#allocation8 + $0x108] sm:$0xf]
        %v1257 = vld [vmem:[#allocation8 + $0x10c] sm:$0xf]
        %v1258 = vld [vmem:[#allocation8 + $0x110] sm:$0xf]
        %v1259 = vld [vmem:[#allocation8 + $0x114] sm:$0xf]
        %v1260 = vld [vmem:[#allocation8 + $0x118] sm:$0xf]
        %v1261 = vld [vmem:[#allocation8 + $0x11c] sm:$0xf]
        %v1262 = vld [vmem:[#allocation8 + $0x120] sm:$0xf]
        %v1263 = vld [vmem:[#allocation8 + $0x124] sm:$0xf]
        %v1264 = vld [vmem:[#allocation8 + $0x128] sm:$0xf]
        %v1265 = vld [vmem:[#allocation8 + $0x12c] sm:$0xf]
        %v1266 = vld [vmem:[#allocation8 + $0x130] sm:$0xf]
        %v1267 = vld [vmem:[#allocation8 + $0x134] sm:$0xf]
        %v1268 = vld [vmem:[#allocation8 + $0x138] sm:$0xf]
        %v1269 = vld [vmem:[#allocation8 + $0x13c] sm:$0xf]
        %v1270 = vld [vmem:[#allocation8 + $0x140] sm:$0xf]
        %v1271 = vld [vmem:[#allocation8 + $0x144] sm:$0xf]
        %v1272 = vld [vmem:[#allocation8 + $0x148] sm:$0xf]
        %v1273 = vld [vmem:[#allocation8 + $0x14c] sm:$0xf]
        %v1274 = vld [vmem:[#allocation8 + $0x150] sm:$0xf]
        %v1275 = vld [vmem:[#allocation8 + $0x154] sm:$0xf]
        %v1276 = vld [vmem:[#allocation8 + $0x158] sm:$0xf]
        %v1277 = vld [vmem:[#allocation8 + $0x15c] sm:$0xf]
        %v1278 = vld [vmem:[#allocation8 + $0x160] sm:$0xf]
        %v1279 = vld [vmem:[#allocation8 + $0x164] sm:$0xf]
        %v1280 = vld [vmem:[#allocation8 + $0x168] sm:$0xf]
        %v1281 = vld [vmem:[#allocation8 + $0x16c] sm:$0xf]
        %v1282 = vld [vmem:[#allocation8 + $0x170] sm:$0xf]
        %v1283 = vld [vmem:[#allocation8 + $0x174] sm:$0xf]
        %v1284 = vld [vmem:[#allocation8 + $0x178] sm:$0xf]
        %v1285 = vld [vmem:[#allocation8 + $0x17c] sm:$0xf]
        %v1286 = vld [vmem:[#allocation8 + $0x180] sm:$0xf]
        %v1287 = vld [vmem:[#allocation8 + $0x184] sm:$0xf]
        %v1288 = vld [vmem:[#allocation8 + $0x188] sm:$0xf]
        %v1289 = vld [vmem:[#allocation8 + $0x18c] sm:$0xf]
        %v1290 = vld [vmem:[#allocation8 + $0x190] sm:$0xf]
        %v1291 = vld [vmem:[#allocation8 + $0x194] sm:$0xf]
        %v1292 = vld [vmem:[#allocation8 + $0x198] sm:$0xf]
        %v1293 = vld [vmem:[#allocation8 + $0x19c] sm:$0xf]
        %v1294 = vld [vmem:[#allocation8 + $0x1a0] sm:$0xf]
        %v1295 = vld [vmem:[#allocation8 + $0x1a4] sm:$0xf]
        %v1296 = vld [vmem:[#allocation8 + $0x1a8] sm:$0xf]
        %v1297 = vld [vmem:[#allocation8 + $0x1ac] sm:$0xf]
        %v1298 = vld [vmem:[#allocation8 + $0x1b0] sm:$0xf]
        %v1299 = vld [vmem:[#allocation8 + $0x1b4] sm:$0xf]
        %v1300 = vld [vmem:[#allocation8 + $0x1b8] sm:$0xf]
        %v1301 = vld [vmem:[#allocation8 + $0x1bc] sm:$0xf]
        %v1302 = vld [vmem:[#allocation8 + $0x1c0] sm:$0xf]
        %v1303 = vld [vmem:[#allocation8 + $0x1c4] sm:$0xf]
        %v1304 = vld [vmem:[#allocation8 + $0x1c8] sm:$0xf]
        %v1305 = vld [vmem:[#allocation8 + $0x1cc] sm:$0xf]
        %v1306 = vld [vmem:[#allocation8 + $0x1d0] sm:$0xf]
        %v1307 = vld [vmem:[#allocation8 + $0x1d4] sm:$0xf]
        %v1308 = vld [vmem:[#allocation8 + $0x1d8] sm:$0xf]
        %v1309 = vld [vmem:[#allocation8 + $0x1dc] sm:$0xf]
        %v1310 = vld [vmem:[#allocation8 + $0x1e0] sm:$0xf]
        %v1311 = vld [vmem:[#allocation8 + $0x1e4] sm:$0xf]
        %v1312 = vld [vmem:[#allocation8 + $0x1e8] sm:$0xf]
        %v1313 = vld [vmem:[#allocation8 + $0x1ec] sm:$0xf]
        %v1314 = vld [vmem:[#allocation8 + $0x1f0] sm:$0xf]
        %v1315 = vld [vmem:[#allocation8 + $0x1f4] sm:$0xf]
        %v1316 = vld [vmem:[#allocation8 + $0x1f8] sm:$0xf]
        %v1317 = vld [vmem:[#allocation8 + $0x1fc] sm:$0xf]
        %v1318 = vld [vmem:[#allocation8 + $0x200] sm:$0xf]
        %v1319 = vld [vmem:[#allocation8 + $0x204] sm:$0xf]
        %v1320 = vld [vmem:[#allocation8 + $0x208] sm:$0xf]
        %v1321 = vld [vmem:[#allocation8 + $0x20c] sm:$0xf]
        %v1322 = vld [vmem:[#allocation8 + $0x210] sm:$0xf]
        %v1323 = vld [vmem:[#allocation8 + $0x214] sm:$0xf]
        %v1324 = vld [vmem:[#allocation8 + $0x218] sm:$0xf]
        %v1325 = vld [vmem:[#allocation8 + $0x21c] sm:$0xf]
        %v1326 = vld [vmem:[#allocation8 + $0x220] sm:$0xf]
        %v1327 = vld [vmem:[#allocation8 + $0x224] sm:$0xf]
        %v1328 = vld [vmem:[#allocation8 + $0x228] sm:$0xf]
        %v1329 = vld [vmem:[#allocation8 + $0x22c] sm:$0xf]
        %v1330 = vld [vmem:[#allocation8 + $0x230] sm:$0xf]
        %v1331 = vld [vmem:[#allocation8 + $0x234] sm:$0xf]
        %v1332 = vld [vmem:[#allocation8 + $0x238] sm:$0xf]
        %v1333 = vld [vmem:[#allocation8 + $0x23c] sm:$0xf]
        %v1334 = vld [vmem:[%s5] sm:$0x1]
        %v1336 = vlaneseq
        %v1337 = vshrl.u32 %v1336, 7
        %v1338 = vsub.s32 0, %v1337
        %v1339 = vrot.slane %v1334, %v1338
        %v1341 = vpack.c.b16 %v776, %v774
        %v1342 = vpack.c.b16 %v1148, %v1142
        %v1343 = vpack.c.b16 %v1149, %v1143
        %v1344 = vpack.c.b16 %v904, %v902
        %v1345 = vpack.c.b16 %v1150, %v1144
        %v1346 = vpack.c.b16 %v1151, %v1145
        %v1347 = vpack.c.b16 %v1032, %v1030
        %v1348 = vpack.c.b16 %v1152, %v1146
        %v1349 = vpack.c.b16 %v1153, %v1147
        %v1350 = vpack.c.b16 %v780, %v778
        %v1351 = vpack.c.b16 %v1160, %v1154
        %v1352 = vpack.c.b16 %v1161, %v1155
        %v1353 = vpack.c.b16 %v908, %v906
        %v1354 = vpack.c.b16 %v1162, %v1156
        %v1355 = vpack.c.b16 %v1163, %v1157
        %v1356 = vpack.c.b16 %v1036, %v1034
        %v1357 = vpack.c.b16 %v1164, %v1158
        %v1358 = vpack.c.b16 %v1165, %v1159
        %v1359 = vpack.c.b16 %v784, %v782
        %v1360 = vpack.c.b16 %v1172, %v1166
        %v1361 = vpack.c.b16 %v1173, %v1167
        %v1362 = vpack.c.b16 %v912, %v910
        %v1363 = vpack.c.b16 %v1174, %v1168
        %v1364 = vpack.c.b16 %v1175, %v1169
        %v1365 = vpack.c.b16 %v1040, %v1038
        %v1366 = vpack.c.b16 %v1176, %v1170
        %v1367 = vpack.c.b16 %v1177, %v1171
        %v1368 = vpack.c.b16 %v788, %v786
        %v1369 = vpack.c.b16 %v1184, %v1178
        %v1370 = vpack.c.b16 %v1185, %v1179
        %v1371 = vpack.c.b16 %v916, %v914
        %v1372 = vpack.c.b16 %v1186, %v1180
        %v1373 = vpack.c.b16 %v1187, %v1181
        %v1374 = vpack.c.b16 %v1044, %v1042
        %v1375 = vpack.c.b16 %v1188, %v1182
        %v1376 = vpack.c.b16 %v1189, %v1183
        %v1557 = vunpack.c.l.b16 %v1190
        %v1558 = vunpack.c.l.b16 %v1191
        %v1559 = vunpack.c.l.b16 %v1192
        %v1560 = vunpack.c.l.b16 %v1193
        %v1561 = vunpack.c.l.b16 %v1194
        %v1562 = vunpack.c.l.b16 %v1195
        %v1563 = vunpack.c.l.b16 %v1196
        %v1564 = vunpack.c.l.b16 %v1197
        %v1565 = vunpack.c.l.b16 %v1198
        %v1566 = vunpack.c.l.b16 %v1199
        %v1567 = vunpack.c.l.b16 %v1200
        %v1568 = vunpack.c.l.b16 %v1201
        %v1569 = vunpack.c.l.b16 %v1202
        %v1570 = vunpack.c.l.b16 %v1203
        %v1571 = vunpack.c.l.b16 %v1204
        %v1572 = vunpack.c.l.b16 %v1205
        %v1573 = vunpack.c.l.b16 %v1206
        %v1574 = vunpack.c.l.b16 %v1207
        %v1575 = vunpack.c.l.b16 %v1208
        %v1576 = vunpack.c.l.b16 %v1209
        %v1577 = vunpack.c.l.b16 %v1210
        %v1578 = vunpack.c.l.b16 %v1211
        %v1579 = vunpack.c.l.b16 %v1212
        %v1580 = vunpack.c.l.b16 %v1213
        %v1581 = vunpack.c.l.b16 %v1214
        %v1582 = vunpack.c.l.b16 %v1215
        %v1583 = vunpack.c.l.b16 %v1216
        %v1584 = vunpack.c.l.b16 %v1217
        %v1585 = vunpack.c.l.b16 %v1218
        %v1586 = vunpack.c.l.b16 %v1219
        %v1587 = vunpack.c.l.b16 %v1220
        %v1588 = vunpack.c.l.b16 %v1221
        %v1589 = vunpack.c.l.b16 %v1222
        %v1590 = vunpack.c.l.b16 %v1223
        %v1591 = vunpack.c.l.b16 %v1224
        %v1592 = vunpack.c.l.b16 %v1225
        %v1593 = vunpack.c.l.b16 %v1226
        %v1594 = vunpack.c.l.b16 %v1227
        %v1595 = vunpack.c.l.b16 %v1228
        %v1596 = vunpack.c.l.b16 %v1229
        %v1597 = vunpack.c.l.b16 %v1230
        %v1598 = vunpack.c.l.b16 %v1231
        %v1599 = vunpack.c.l.b16 %v1232
        %v1600 = vunpack.c.l.b16 %v1233
        %v1601 = vunpack.c.l.b16 %v1234
        %v1602 = vunpack.c.l.b16 %v1235
        %v1603 = vunpack.c.l.b16 %v1236
        %v1604 = vunpack.c.l.b16 %v1237
        %v1605 = vunpack.c.l.b16 %v1238
        %v1606 = vunpack.c.l.b16 %v1239
        %v1607 = vunpack.c.l.b16 %v1240
        %v1608 = vunpack.c.l.b16 %v1241
        %v1609 = vunpack.c.l.b16 %v1242
        %v1610 = vunpack.c.l.b16 %v1243
        %v1611 = vunpack.c.l.b16 %v1244
        %v1612 = vunpack.c.l.b16 %v1245
        %v1613 = vunpack.c.l.b16 %v1246
        %v1614 = vunpack.c.l.b16 %v1247
        %v1615 = vunpack.c.l.b16 %v1248
        %v1616 = vunpack.c.l.b16 %v1249
        %v1617 = vunpack.c.l.b16 %v1250
        %v1618 = vunpack.c.l.b16 %v1251
        %v1619 = vunpack.c.l.b16 %v1252
        %v1620 = vunpack.c.l.b16 %v1253
        %v1621 = vunpack.c.l.b16 %v1254
        %v1622 = vunpack.c.l.b16 %v1255
        %v1623 = vunpack.c.l.b16 %v1256
        %v1624 = vunpack.c.l.b16 %v1257
        %v1625 = vunpack.c.l.b16 %v1258
        %v1626 = vunpack.c.l.b16 %v1259
        %v1627 = vunpack.c.l.b16 %v1260
        %v1628 = vunpack.c.l.b16 %v1261
        %v1629 = vunpack.c.l.b16 %v1262
        %v1630 = vunpack.c.l.b16 %v1263
        %v1631 = vunpack.c.l.b16 %v1264
        %v1632 = vunpack.c.l.b16 %v1265
        %v1633 = vunpack.c.l.b16 %v1266
        %v1634 = vunpack.c.l.b16 %v1267
        %v1635 = vunpack.c.l.b16 %v1268
        %v1636 = vunpack.c.l.b16 %v1269
        %v1637 = vunpack.c.l.b16 %v1270
        %v1638 = vunpack.c.l.b16 %v1271
        %v1639 = vunpack.c.l.b16 %v1272
        %v1640 = vunpack.c.l.b16 %v1273
        %v1641 = vunpack.c.l.b16 %v1274
        %v1642 = vunpack.c.l.b16 %v1275
        %v1643 = vunpack.c.l.b16 %v1276
        %v1644 = vunpack.c.l.b16 %v1277
        %v1645 = vunpack.c.l.b16 %v1278
        %v1646 = vunpack.c.l.b16 %v1279
        %v1647 = vunpack.c.l.b16 %v1280
        %v1648 = vunpack.c.l.b16 %v1281
        %v1649 = vunpack.c.l.b16 %v1282
        %v1650 = vunpack.c.l.b16 %v1283
        %v1651 = vunpack.c.l.b16 %v1284
        %v1652 = vunpack.c.l.b16 %v1285
        %v1653 = vunpack.c.l.b16 %v1286
        %v1654 = vunpack.c.l.b16 %v1287
        %v1655 = vunpack.c.l.b16 %v1288
        %v1656 = vunpack.c.l.b16 %v1289
        %v1657 = vunpack.c.l.b16 %v1290
        %v1658 = vunpack.c.l.b16 %v1291
        %v1659 = vunpack.c.l.b16 %v1292
        %v1660 = vunpack.c.l.b16 %v1293
        %v1661 = vunpack.c.l.b16 %v1294
        %v1662 = vunpack.c.l.b16 %v1295
        %v1663 = vunpack.c.l.b16 %v1296
        %v1664 = vunpack.c.l.b16 %v1297
        %v1665 = vunpack.c.l.b16 %v1298
        %v1666 = vunpack.c.l.b16 %v1299
        %v1667 = vunpack.c.l.b16 %v1300
        %v1668 = vunpack.c.l.b16 %v1301
        %v1669 = vunpack.c.l.b16 %v1302
        %v1670 = vunpack.c.l.b16 %v1303
        %v1671 = vunpack.c.l.b16 %v1304
        %v1672 = vunpack.c.l.b16 %v1305
        %v1673 = vunpack.c.l.b16 %v1306
        %v1674 = vunpack.c.l.b16 %v1307
        %v1675 = vunpack.c.l.b16 %v1308
        %v1676 = vunpack.c.l.b16 %v1309
        %v1677 = vunpack.c.l.b16 %v1310
        %v1678 = vunpack.c.l.b16 %v1311
        %v1679 = vunpack.c.l.b16 %v1312
        %v1680 = vunpack.c.l.b16 %v1313
        %v1681 = vunpack.c.l.b16 %v1314
        %v1682 = vunpack.c.l.b16 %v1315
        %v1683 = vunpack.c.l.b16 %v1316
        %v1684 = vunpack.c.l.b16 %v1317
        %v1685 = vunpack.c.l.b16 %v1318
        %v1686 = vunpack.c.l.b16 %v1319
        %v1687 = vunpack.c.l.b16 %v1320
        %v1688 = vunpack.c.l.b16 %v1321
        %v1689 = vunpack.c.l.b16 %v1322
        %v1690 = vunpack.c.l.b16 %v1323
        %v1691 = vunpack.c.l.b16 %v1324
        %v1692 = vunpack.c.l.b16 %v1325
        %v1693 = vunpack.c.l.b16 %v1326
        %v1694 = vunpack.c.l.b16 %v1327
        %v1695 = vunpack.c.l.b16 %v1328
        %v1696 = vunpack.c.l.b16 %v1329
        %v1697 = vunpack.c.l.b16 %v1330
        %v1698 = vunpack.c.l.b16 %v1331
        %v1699 = vunpack.c.l.b16 %v1332
        %v1700 = vunpack.c.l.b16 %v1333
        %v1701 = vpack.c.b16 %v1558, %v1557
        %v1702 = vpack.c.b16 %v1560, %v1559
        %v1703 = vpack.c.b16 %v1562, %v1561
        %v1704 = vpack.c.b16 %v1564, %v1563
        %v1705 = vpack.c.b16 %v1566, %v1565
        %v1706 = vpack.c.b16 %v1568, %v1567
        %v1707 = vpack.c.b16 %v1570, %v1569
        %v1708 = vpack.c.b16 %v1572, %v1571
        %v1709 = vpack.c.b16 %v1574, %v1573
        %v1710 = vpack.c.b16 %v1576, %v1575
        %v1711 = vpack.c.b16 %v1578, %v1577
        %v1712 = vpack.c.b16 %v1580, %v1579
        %v1713 = vpack.c.b16 %v1582, %v1581
        %v1714 = vpack.c.b16 %v1584, %v1583
        %v1715 = vpack.c.b16 %v1586, %v1585
        %v1716 = vpack.c.b16 %v1588, %v1587
        %v1717 = vpack.c.b16 %v1590, %v1589
        %v1718 = vpack.c.b16 %v1592, %v1591
        %v1719 = vpack.c.b16 %v1594, %v1593
        %v1720 = vpack.c.b16 %v1596, %v1595
        %v1721 = vpack.c.b16 %v1598, %v1597
        %v1722 = vpack.c.b16 %v1600, %v1599
        %v1723 = vpack.c.b16 %v1602, %v1601
        %v1724 = vpack.c.b16 %v1604, %v1603
        %v1725 = vpack.c.b16 %v1606, %v1605
        %v1726 = vpack.c.b16 %v1608, %v1607
        %v1727 = vpack.c.b16 %v1610, %v1609
        %v1728 = vpack.c.b16 %v1612, %v1611
        %v1729 = vpack.c.b16 %v1614, %v1613
        %v1730 = vpack.c.b16 %v1616, %v1615
        %v1731 = vpack.c.b16 %v1618, %v1617
        %v1732 = vpack.c.b16 %v1620, %v1619
        %v1733 = vpack.c.b16 %v1622, %v1621
        %v1734 = vpack.c.b16 %v1624, %v1623
        %v1735 = vpack.c.b16 %v1626, %v1625
        %v1736 = vpack.c.b16 %v1628, %v1627
        %v1737 = vpack.c.b16 %v1630, %v1629
        %v1738 = vpack.c.b16 %v1632, %v1631
        %v1739 = vpack.c.b16 %v1634, %v1633
        %v1740 = vpack.c.b16 %v1636, %v1635
        %v1741 = vpack.c.b16 %v1638, %v1637
        %v1742 = vpack.c.b16 %v1640, %v1639
        %v1743 = vpack.c.b16 %v1642, %v1641
        %v1744 = vpack.c.b16 %v1644, %v1643
        %v1745 = vpack.c.b16 %v1646, %v1645
        %v1746 = vpack.c.b16 %v1648, %v1647
        %v1747 = vpack.c.b16 %v1650, %v1649
        %v1748 = vpack.c.b16 %v1652, %v1651
        %v1749 = vpack.c.b16 %v1654, %v1653
        %v1750 = vpack.c.b16 %v1656, %v1655
        %v1751 = vpack.c.b16 %v1658, %v1657
        %v1752 = vpack.c.b16 %v1660, %v1659
        %v1753 = vpack.c.b16 %v1662, %v1661
        %v1754 = vpack.c.b16 %v1664, %v1663
        %v1755 = vpack.c.b16 %v1666, %v1665
        %v1756 = vpack.c.b16 %v1668, %v1667
        %v1757 = vpack.c.b16 %v1670, %v1669
        %v1758 = vpack.c.b16 %v1672, %v1671
        %v1759 = vpack.c.b16 %v1674, %v1673
        %v1760 = vpack.c.b16 %v1676, %v1675
        %v1761 = vpack.c.b16 %v1678, %v1677
        %v1762 = vpack.c.b16 %v1680, %v1679
        %v1763 = vpack.c.b16 %v1682, %v1681
        %v1764 = vpack.c.b16 %v1684, %v1683
        %v1765 = vpack.c.b16 %v1686, %v1685
        %v1766 = vpack.c.b16 %v1688, %v1687
        %v1767 = vpack.c.b16 %v1690, %v1689
        %v1768 = vpack.c.b16 %v1692, %v1691
        %v1769 = vpack.c.b16 %v1694, %v1693
        %v1770 = vpack.c.b16 %v1696, %v1695
        %v1771 = vpack.c.b16 %v1698, %v1697
        %v1772 = vpack.c.b16 %v1700, %v1699
        %1845 = vmatprep.subr.bf16.mxu0 0
        %1846 = vmatpush1.bf16.msra.mxu0 %v1701
        %1847 = vmatprep.subr.bf16.mxu0 0
        %1848 = vmatpush1.bf16.msra.mxu0 %v1702
        %1849 = vmatprep.subr.bf16.mxu0 0
        %1850 = vmatpush1.bf16.msra.mxu0 %v1703
        %1851 = vmatprep.subr.bf16.mxu0 0
        %1852 = vmatpush1.bf16.msra.mxu0 %v1704
        %1853 = vmatprep.subr.bf16.mxu0 0
        %1854 = vmatpush1.bf16.msra.mxu0 %v1705
        %1855 = vmatprep.subr.bf16.mxu0 0
        %1856 = vmatpush1.bf16.msra.mxu0 %v1706
        %1857 = vmatprep.subr.bf16.mxu0 0
        %1858 = vmatpush1.bf16.msra.mxu0 %v1707
        %1859 = vmatprep.subr.bf16.mxu0 0
        %1860 = vmatpush1.bf16.msra.mxu0 %v1708
        %1861 = vmatprep.subr.bf16.mxu0 0
        %1862 = vmatpush1.bf16.msra.mxu0 %v1709
        %1863 = vmatprep.subr.bf16.mxu0 0
        %1864 = vmatpush1.bf16.msra.mxu0 %v1710
        %1865 = vmatprep.subr.bf16.mxu0 0
        %1866 = vmatpush1.bf16.msra.mxu0 %v1711
        %1867 = vmatprep.subr.bf16.mxu0 0
        %1868 = vmatpush1.bf16.msra.mxu0 %v1712
        %1869 = vmatprep.subr.bf16.mxu0 0
        %1870 = vmatpush1.bf16.msra.mxu0 %v1713
        %1871 = vmatprep.subr.bf16.mxu0 0
        %1872 = vmatpush1.bf16.msra.mxu0 %v1714
        %1873 = vmatprep.subr.bf16.mxu0 0
        %1874 = vmatpush1.bf16.msra.mxu0 %v1715
        %1875 = vmatprep.subr.bf16.mxu0 0
        %1876 = vmatpush1.bf16.msra.mxu0 %v1716
        %1877 = vmatprep.mubr.bf16.mxu0 %v1342
        %1878 = vmatmul.mubr.bf16.gmra.mrb[0].mxu0 %v1341
        %v1879 = vpop.f32.mrb[0].mxu0
        %v1880 = vadd.f32 %v1339, %v1879
        %v1881 = vpop.f32.mrb[0].mxu0
        %v1882 = vpop.f32.mrb[0].mxu0
        %v1883 = vadd.f32 %v1339, %v1882
        %v1884 = vpop.f32.mrb[0].mxu0
        %1885 = vmatprep.mubr.bf16.mxu0 %v1351
        %1886 = vmatmul.mubr.bf16.gmra.mrb[0].mxu0 %v1350
        %v1887 = vpop.f32.mrb[0].mxu0
        %v1888 = vadd.f32 %v1339, %v1887
        %v1889 = vpop.f32.mrb[0].mxu0
        %v1890 = vpop.f32.mrb[0].mxu0
        %v1891 = vadd.f32 %v1339, %v1890
        %v1892 = vpop.f32.mrb[0].mxu0
        %1893 = vmatprep.mubr.bf16.mxu0 %v1360
        %1894 = vmatmul.mubr.bf16.gmra.mrb[0].mxu0 %v1359
        %v1895 = vpop.f32.mrb[0].mxu0
        %v1896 = vadd.f32 %v1339, %v1895
        %v1897 = vpop.f32.mrb[0].mxu0
        %v1898 = vpop.f32.mrb[0].mxu0
        %v1899 = vadd.f32 %v1339, %v1898
        %v1900 = vpop.f32.mrb[0].mxu0
        %1901 = vmatprep.mubr.bf16.mxu0 %v1369
        %1902 = vmatmul.mubr.bf16.gmra.mrb[0].mxu0 %v1368
        %v1903 = vpop.f32.mrb[0].mxu0
        %v1904 = vadd.f32 %v1339, %v1903
        %v1905 = vpop.f32.mrb[0].mxu0
        %v1906 = vpop.f32.mrb[0].mxu0
        %v1907 = vadd.f32 %v1339, %v1906
        %v1908 = vpop.f32.mrb[0].mxu0
        %1909 = vdwg.mxu0
        %1910 = vmatprep.subr.bf16.mxu0 0
        %1911 = vmatpush1.bf16.msra.mxu0 %v1717
        %1912 = vmatprep.subr.bf16.mxu0 0
        %1913 = vmatpush1.bf16.msra.mxu0 %v1718
        %1914 = vmatprep.subr.bf16.mxu0 0
        %1915 = vmatpush1.bf16.msra.mxu0 %v1719
        %1916 = vmatprep.subr.bf16.mxu0 0
        %1917 = vmatpush1.bf16.msra.mxu0 %v1720
        %1918 = vmatprep.subr.bf16.mxu0 0
        %1919 = vmatpush1.bf16.msra.mxu0 %v1721
        %1920 = vmatprep.subr.bf16.mxu0 0
        %1921 = vmatpush1.bf16.msra.mxu0 %v1722
        %1922 = vmatprep.subr.bf16.mxu0 0
        %1923 = vmatpush1.bf16.msra.mxu0 %v1723
        %1924 = vmatprep.subr.bf16.mxu0 0
        %1925 = vmatpush1.bf16.msra.mxu0 %v1724
        %1926 = vmatprep.subr.bf16.mxu0 0
        %1927 = vmatpush1.bf16.msra.mxu0 %v1725
        %1928 = vmatprep.subr.bf16.mxu0 0
        %1929 = vmatpush1.bf16.msra.mxu0 %v1726
        %1930 = vmatprep.subr.bf16.mxu0 0
        %1931 = vmatpush1.bf16.msra.mxu0 %v1727
        %1932 = vmatprep.subr.bf16.mxu0 0
        %1933 = vmatpush1.bf16.msra.mxu0 %v1728
        %1934 = vmatprep.subr.bf16.mxu0 0
        %1935 = vmatpush1.bf16.msra.mxu0 %v1729
        %1936 = vmatprep.subr.bf16.mxu0 0
        %1937 = vmatpush1.bf16.msra.mxu0 %v1730
        %1938 = vmatprep.subr.bf16.mxu0 0
        %1939 = vmatpush1.bf16.msra.mxu0 %v1731
        %1940 = vmatprep.subr.bf16.mxu0 0
        %1941 = vmatpush1.bf16.msra.mxu0 %v1732
        %1942 = vmatprep.mubr.bf16.mxu0 %v1344
        %1943 = vmatmul.mubr.bf16.gmra.mrb[0].mxu0 %v1343
        %v1944 = vpop.f32.mrb[0].mxu0
        %v1945 = vadd.f32 %v1880, %v1944
        %v1946 = vpop.f32.mrb[0].mxu0
        %v1947 = vpop.f32.mrb[0].mxu0
        %v1948 = vadd.f32 %v1883, %v1947
        %v1949 = vpop.f32.mrb[0].mxu0
        %1950 = vmatprep.mubr.bf16.mxu0 %v1353
        %1951 = vmatmul.mubr.bf16.gmra.mrb[0].mxu0 %v1352
        %v1952 = vpop.f32.mrb[0].mxu0
        %v1953 = vadd.f32 %v1888, %v1952
        %v1954 = vpop.f32.mrb[0].mxu0
        %v1955 = vpop.f32.mrb[0].mxu0
        %v1956 = vadd.f32 %v1891, %v1955
        %v1957 = vpop.f32.mrb[0].mxu0
        %1958 = vmatprep.mubr.bf16.mxu0 %v1362
        %1959 = vmatmul.mubr.bf16.gmra.mrb[0].mxu0 %v1361
        %v1960 = vpop.f32.mrb[0].mxu0
        %v1961 = vadd.f32 %v1896, %v1960
        %v1962 = vpop.f32.mrb[0].mxu0
        %v1963 = vpop.f32.mrb[0].mxu0
        %v1964 = vadd.f32 %v1899, %v1963
        %v1965 = vpop.f32.mrb[0].mxu0
        %1966 = vmatprep.mubr.bf16.mxu0 %v1371
        %1967 = vmatmul.mubr.bf16.gmra.mrb[0].mxu0 %v1370
        %v1968 = vpop.f32.mrb[0].mxu0
        %v1969 = vadd.f32 %v1904, %v1968
        %v1970 = vpop.f32.mrb[0].mxu0
        %v1971 = vpop.f32.mrb[0].mxu0
        %v1972 = vadd.f32 %v1907, %v1971
        %v1973 = vpop.f32.mrb[0].mxu0
        %1974 = vdwg.mxu0
        %1975 = vmatprep.subr.bf16.mxu0 0
        %1976 = vmatpush1.bf16.msra.mxu0 %v1733
        %1977 = vmatprep.subr.bf16.mxu0 0
        %1978 = vmatpush1.bf16.msra.mxu0 %v1734
        %1979 = vmatprep.subr.bf16.mxu0 0
        %1980 = vmatpush1.bf16.msra.mxu0 %v1735
        %1981 = vmatprep.subr.bf16.mxu0 0
        %1982 = vmatpush1.bf16.msra.mxu0 %v1736
        %1983 = vmatprep.subr.bf16.mxu0 0
        %1984 = vmatpush1.bf16.msra.mxu0 %v1737
        %1985 = vmatprep.subr.bf16.mxu0 0
        %1986 = vmatpush1.bf16.msra.mxu0 %v1738
        %1987 = vmatprep.subr.bf16.mxu0 0
        %1988 = vmatpush1.bf16.msra.mxu0 %v1739
        %1989 = vmatprep.subr.bf16.mxu0 0
        %1990 = vmatpush1.bf16.msra.mxu0 %v1740
        %1991 = vmatprep.subr.bf16.mxu0 0
        %1992 = vmatpush1.bf16.msra.mxu0 %v1741
        %1993 = vmatprep.subr.bf16.mxu0 0
        %1994 = vmatpush1.bf16.msra.mxu0 %v1742
        %1995 = vmatprep.subr.bf16.mxu0 0
        %1996 = vmatpush1.bf16.msra.mxu0 %v1743
        %1997 = vmatprep.subr.bf16.mxu0 0
        %1998 = vmatpush1.bf16.msra.mxu0 %v1744
        %1999 = vmatprep.subr.bf16.mxu0 0
        %2000 = vmatpush1.bf16.msra.mxu0 %v1745
        %2001 = vmatprep.subr.bf16.mxu0 0
        %2002 = vmatpush1.bf16.msra.mxu0 %v1746
        %2003 = vmatprep.subr.bf16.mxu0 0
        %2004 = vmatpush1.bf16.msra.mxu0 %v1747
        %2005 = vmatprep.subr.bf16.mxu0 0
        %2006 = vmatpush1.bf16.msra.mxu0 %v1748
        %2007 = vmatprep.mubr.bf16.mxu0 %v1346
        %2008 = vmatmul.mubr.bf16.gmra.mrb[0].mxu0 %v1345
        %v2009 = vpop.f32.mrb[0].mxu0
        %v2010 = vadd.f32 %v1945, %v2009
        %v2011 = vpop.f32.mrb[0].mxu0
        %v2012 = vpop.f32.mrb[0].mxu0
        %v2013 = vadd.f32 %v1948, %v2012
        %v2014 = vpop.f32.mrb[0].mxu0
        %2015 = vmatprep.mubr.bf16.mxu0 %v1355
        %2016 = vmatmul.mubr.bf16.gmra.mrb[0].mxu0 %v1354
        %v2017 = vpop.f32.mrb[0].mxu0
        %v2018 = vadd.f32 %v1953, %v2017
        %v2019 = vpop.f32.mrb[0].mxu0
        %v2020 = vpop.f32.mrb[0].mxu0
        %v2021 = vadd.f32 %v1956, %v2020
        %v2022 = vpop.f32.mrb[0].mxu0
        %2023 = vmatprep.mubr.bf16.mxu0 %v1364
        %2024 = vmatmul.mubr.bf16.gmra.mrb[0].mxu0 %v1363
        %v2025 = vpop.f32.mrb[0].mxu0
        %v2026 = vadd.f32 %v1961, %v2025
        %v2027 = vpop.f32.mrb[0].mxu0
        %v2028 = vpop.f32.mrb[0].mxu0
        %v2029 = vadd.f32 %v1964, %v2028
        %v2030 = vpop.f32.mrb[0].mxu0
        %2031 = vmatprep.mubr.bf16.mxu0 %v1373
        %2032 = vmatmul.mubr.bf16.gmra.mrb[0].mxu0 %v1372
        %v2033 = vpop.f32.mrb[0].mxu0
        %v2034 = vadd.f32 %v1969, %v2033
        %v2035 = vpop.f32.mrb[0].mxu0
        %v2036 = vpop.f32.mrb[0].mxu0
        %v2037 = vadd.f32 %v1972, %v2036
        %v2038 = vpop.f32.mrb[0].mxu0
        %2039 = vdwg.mxu0
        %2040 = vmatprep.subr.bf16.mxu0 0
        %2041 = vmatpush1.bf16.msra.mxu0 %v1749
        %2042 = vmatprep.subr.bf16.mxu0 0
        %2043 = vmatpush1.bf16.msra.mxu0 %v1750
        %2044 = vmatprep.subr.bf16.mxu0 0
        %2045 = vmatpush1.bf16.msra.mxu0 %v1751
        %2046 = vmatprep.subr.bf16.mxu0 0
        %2047 = vmatpush1.bf16.msra.mxu0 %v1752
        %2048 = vmatprep.subr.bf16.mxu0 0
        %2049 = vmatpush1.bf16.msra.mxu0 %v1753
        %2050 = vmatprep.subr.bf16.mxu0 0
        %2051 = vmatpush1.bf16.msra.mxu0 %v1754
        %2052 = vmatprep.subr.bf16.mxu0 0
        %2053 = vmatpush1.bf16.msra.mxu0 %v1755
        %2054 = vmatprep.subr.bf16.mxu0 0
        %2055 = vmatpush1.bf16.msra.mxu0 %v1756
        %2056 = vmatprep.subr.bf16.mxu0 0
        %2057 = vmatpush1.bf16.msra.mxu0 %v1757
        %2058 = vmatprep.subr.bf16.mxu0 0
        %2059 = vmatpush1.bf16.msra.mxu0 %v1758
        %2060 = vmatprep.subr.bf16.mxu0 0
        %2061 = vmatpush1.bf16.msra.mxu0 %v1759
        %2062 = vmatprep.subr.bf16.mxu0 0
        %2063 = vmatpush1.bf16.msra.mxu0 %v1760
        %2064 = vmatprep.subr.bf16.mxu0 0
        %2065 = vmatpush1.bf16.msra.mxu0 %v1761
        %2066 = vmatprep.subr.bf16.mxu0 0
        %2067 = vmatpush1.bf16.msra.mxu0 %v1762
        %2068 = vmatprep.subr.bf16.mxu0 0
        %2069 = vmatpush1.bf16.msra.mxu0 %v1763
        %2070 = vmatprep.subr.bf16.mxu0 0
        %2071 = vmatpush1.bf16.msra.mxu0 %v1764
        %2072 = vmatprep.mubr.bf16.mxu0 %v1348
        %2073 = vmatmul.mubr.bf16.gmra.mrb[0].mxu0 %v1347
        %v2074 = vpop.f32.mrb[0].mxu0
        %v2075 = vadd.f32 %v2010, %v2074
        %v2076 = vpop.f32.mrb[0].mxu0
        %v2077 = vpop.f32.mrb[0].mxu0
        %v2078 = vadd.f32 %v2013, %v2077
        %v2079 = vpop.f32.mrb[0].mxu0
        %2080 = vmatprep.mubr.bf16.mxu0 %v1357
        %2081 = vmatmul.mubr.bf16.gmra.mrb[0].mxu0 %v1356
        %v2082 = vpop.f32.mrb[0].mxu0
        %v2083 = vadd.f32 %v2018, %v2082
        %v2084 = vpop.f32.mrb[0].mxu0
        %v2085 = vpop.f32.mrb[0].mxu0
        %v2086 = vadd.f32 %v2021, %v2085
        %v2087 = vpop.f32.mrb[0].mxu0
        %2088 = vmatprep.mubr.bf16.mxu0 %v1366
        %2089 = vmatmul.mubr.bf16.gmra.mrb[0].mxu0 %v1365
        %v2090 = vpop.f32.mrb[0].mxu0
        %v2091 = vadd.f32 %v2026, %v2090
        %v2092 = vpop.f32.mrb[0].mxu0
        %v2093 = vpop.f32.mrb[0].mxu0
        %v2094 = vadd.f32 %v2029, %v2093
        %v2095 = vpop.f32.mrb[0].mxu0
        %2096 = vmatprep.mubr.bf16.mxu0 %v1375
        %2097 = vmatmul.mubr.bf16.gmra.mrb[0].mxu0 %v1374
        %v2098 = vpop.f32.mrb[0].mxu0
        %v2099 = vadd.f32 %v2034, %v2098
        %v2100 = vpop.f32.mrb[0].mxu0
        %v2101 = vpop.f32.mrb[0].mxu0
        %v2102 = vadd.f32 %v2037, %v2101
        %v2103 = vpop.f32.mrb[0].mxu0
        %2104 = vdwg.mxu0
        %2105 = vmatprep.subr.bf16.mxu0 0
        %2106 = vmatpush1.bf16.msra.mxu0 %v1765
        %2107 = vmatprep.subr.bf16.mxu0 0
        %2108 = vmatpush1.bf16.msra.mxu0 %v1766
        %2109 = vmatprep.subr.bf16.mxu0 0
        %2110 = vmatpush1.bf16.msra.mxu0 %v1767
        %2111 = vmatprep.subr.bf16.mxu0 0
        %2112 = vmatpush1.bf16.msra.mxu0 %v1768
        %2113 = vmatprep.subr.bf16.mxu0 0
        %2114 = vmatpush1.bf16.msra.mxu0 %v1769
        %2115 = vmatprep.subr.bf16.mxu0 0
        %2116 = vmatpush1.bf16.msra.mxu0 %v1770
        %2117 = vmatprep.subr.bf16.mxu0 0
        %2118 = vmatpush1.bf16.msra.mxu0 %v1771
        %2119 = vmatprep.subr.bf16.mxu0 0
        %2120 = vmatpush1.bf16.msra.mxu0 %v1772
        %2121 = vmatprep.subr.bf16.mxu0 0
        %2122 = vmatpush1.bf16.msra.mxu0 0
        %2123 = vmatprep.subr.bf16.mxu0 0
        %2124 = vmatpush1.bf16.msra.mxu0 0
        %2125 = vmatprep.subr.bf16.mxu0 0
        %2126 = vmatpush1.bf16.msra.mxu0 0
        %2127 = vmatprep.subr.bf16.mxu0 0
        %2128 = vmatpush1.bf16.msra.mxu0 0
        %2129 = vmatprep.subr.bf16.mxu0 0
        %2130 = vmatpush1.bf16.msra.mxu0 0
        %2131 = vmatprep.subr.bf16.mxu0 0
        %2132 = vmatpush1.bf16.msra.mxu0 0
        %2133 = vmatprep.subr.bf16.mxu0 0
        %2134 = vmatpush1.bf16.msra.mxu0 0
        %2135 = vmatprep.subr.bf16.mxu0 0
        %2136 = vmatpush1.bf16.msra.mxu0 0
        %2137 = vmatprep.mubr.bf16.mxu0 0
        %2138 = vmatmul.mubr.bf16.gmra.mrb[0].mxu0 %v1349
        %v2139 = vpop.f32.mrb[0].mxu0
        %v2140 = vadd.f32 %v2075, %v2139
        %v2141 = vpop.f32.mrb[0].mxu0
        %v2142 = vpop.f32.mrb[0].mxu0
        %v2143 = vadd.f32 %v2078, %v2142
        %v2144 = vpop.f32.mrb[0].mxu0
        %2145 = vmatprep.mubr.bf16.mxu0 0
        %2146 = vmatmul.mubr.bf16.gmra.mrb[0].mxu0 %v1358
        %v2147 = vpop.f32.mrb[0].mxu0
        %v2148 = vadd.f32 %v2083, %v2147
        %v2149 = vpop.f32.mrb[0].mxu0
        %v2150 = vpop.f32.mrb[0].mxu0
        %v2151 = vadd.f32 %v2086, %v2150
        %v2152 = vpop.f32.mrb[0].mxu0
        %2153 = vmatprep.mubr.bf16.mxu0 0
        %2154 = vmatmul.mubr.bf16.gmra.mrb[0].mxu0 %v1367
        %v2155 = vpop.f32.mrb[0].mxu0
        %v2156 = vadd.f32 %v2091, %v2155
        %v2157 = vpop.f32.mrb[0].mxu0
        %v2158 = vpop.f32.mrb[0].mxu0
        %v2159 = vadd.f32 %v2094, %v2158
        %v2160 = vpop.f32.mrb[0].mxu0
        %2161 = vmatprep.mubr.bf16.mxu0 0
        %2162 = vmatmul.mubr.bf16.gmra.mrb[0].mxu0 %v1376
        %v2163 = vpop.f32.mrb[0].mxu0
        %v2164 = vadd.f32 %v2099, %v2163
        %v2165 = vpop.f32.mrb[0].mxu0
        %v2166 = vpop.f32.mrb[0].mxu0
        %v2167 = vadd.f32 %v2102, %v2166
        %v2168 = vpop.f32.mrb[0].mxu0
        %2169 = vdwg.mxu0
        %v2170 = vmax.f32 %v2140, 0.0
        %v2171 = vmax.f32 %v2143, 0.0
        %v2172 = vmax.f32 %v2148, 0.0
        %v2173 = vmax.f32 %v2151, 0.0
        %v2174 = vmax.f32 %v2156, 0.0
        %v2175 = vmax.f32 %v2159, 0.0
        %v2176 = vmax.f32 %v2164, 0.0
        %v2177 = vmax.f32 %v2167, 0.0
        %v2178 = vpack.c.bf16 %v2171, %v2170
        %v2179 = vpack.c.bf16 %v2173, %v2172
        %v2180 = vpack.c.bf16 %v2175, %v2174
        %v2181 = vpack.c.bf16 %v2177, %v2176
        %v2182 = vld [vmem:[#allocation9] sm:$0xf]
        %v2183 = vld [vmem:[#allocation9 + $0x4] sm:$0xf]
        %v2184 = vld [vmem:[#allocation9 + $0x8] sm:$0xf]
        %v2185 = vld [vmem:[#allocation9 + $0xc] sm:$0xf]
        %v2186 = vld [vmem:[#allocation9 + $0x10] sm:$0xf]
        %v2187 = vld [vmem:[#allocation9 + $0x14] sm:$0xf]
        %v2188 = vld [vmem:[#allocation9 + $0x18] sm:$0xf]
        %v2189 = vld [vmem:[#allocation9 + $0x1c] sm:$0xf]
        %v2190 = vld [vmem:[#allocation9 + $0x20] sm:$0xf]
        %v2191 = vld [vmem:[#allocation9 + $0x24] sm:$0xf]
        %v2192 = vld [vmem:[#allocation9 + $0x28] sm:$0xf]
        %v2193 = vld [vmem:[#allocation9 + $0x2c] sm:$0xf]
        %v2194 = vld [vmem:[#allocation9 + $0x30] sm:$0xf]
        %v2195 = vld [vmem:[#allocation9 + $0x34] sm:$0xf]
        %v2196 = vld [vmem:[#allocation9 + $0x38] sm:$0xf]
        %v2197 = vld [vmem:[#allocation9 + $0x3c] sm:$0xf]
        %v2198 = vld [vmem:[%s6] sm:$0x1]
        %v2200 = vlaneseq
        %v2201 = vshrl.u32 %v2200, 7
        %v2202 = vsub.s32 0, %v2201
        %v2203 = vrot.slane %v2198, %v2202
        %v2221 = vunpack.c.l.b16 %v2182
        %v2222 = vunpack.c.l.b16 %v2183
        %v2223 = vunpack.c.l.b16 %v2184
        %v2224 = vunpack.c.l.b16 %v2185
        %v2225 = vunpack.c.l.b16 %v2186
        %v2226 = vunpack.c.l.b16 %v2187
        %v2227 = vunpack.c.l.b16 %v2188
        %v2228 = vunpack.c.l.b16 %v2189
        %v2229 = vunpack.c.l.b16 %v2190
        %v2230 = vunpack.c.l.b16 %v2191
        %v2231 = vunpack.c.l.b16 %v2192
        %v2232 = vunpack.c.l.b16 %v2193
        %v2233 = vunpack.c.l.b16 %v2194
        %v2234 = vunpack.c.l.b16 %v2195
        %v2235 = vunpack.c.l.b16 %v2196
        %v2236 = vunpack.c.l.b16 %v2197
        %v2237 = vpack.c.b16 %v2222, %v2221
        %v2238 = vpack.c.b16 %v2224, %v2223
        %v2239 = vpack.c.b16 %v2226, %v2225
        %v2240 = vpack.c.b16 %v2228, %v2227
        %v2241 = vpack.c.b16 %v2230, %v2229
        %v2242 = vpack.c.b16 %v2232, %v2231
        %v2243 = vpack.c.b16 %v2234, %v2233
        %v2244 = vpack.c.b16 %v2236, %v2235
        %2253 = vmatprep.subr.bf16.mxu0 0
        %2254 = vmatpush1.bf16.msra.mxu0 %v2237
        %2255 = vmatprep.subr.bf16.mxu0 0
        %2256 = vmatpush1.bf16.msra.mxu0 %v2238
        %2257 = vmatprep.subr.bf16.mxu0 0
        %2258 = vmatpush1.bf16.msra.mxu0 %v2239
        %2259 = vmatprep.subr.bf16.mxu0 0
        %2260 = vmatpush1.bf16.msra.mxu0 %v2240
        %2261 = vmatprep.subr.bf16.mxu0 0
        %2262 = vmatpush1.bf16.msra.mxu0 %v2241
        %2263 = vmatprep.subr.bf16.mxu0 0
        %2264 = vmatpush1.bf16.msra.mxu0 %v2242
        %2265 = vmatprep.subr.bf16.mxu0 0
        %2266 = vmatpush1.bf16.msra.mxu0 %v2243
        %2267 = vmatprep.subr.bf16.mxu0 0
        %2268 = vmatpush1.bf16.msra.mxu0 %v2244
        %2269 = vmatprep.subr.bf16.mxu0 0
        %2270 = vmatpush1.bf16.msra.mxu0 0
        %2271 = vmatprep.subr.bf16.mxu0 0
        %2272 = vmatpush1.bf16.msra.mxu0 0
        %2273 = vmatprep.subr.bf16.mxu0 0
        %2274 = vmatpush1.bf16.msra.mxu0 0
        %2275 = vmatprep.subr.bf16.mxu0 0
        %2276 = vmatpush1.bf16.msra.mxu0 0
        %2277 = vmatprep.subr.bf16.mxu0 0
        %2278 = vmatpush1.bf16.msra.mxu0 0
        %2279 = vmatprep.subr.bf16.mxu0 0
        %2280 = vmatpush1.bf16.msra.mxu0 0
        %2281 = vmatprep.subr.bf16.mxu0 0
        %2282 = vmatpush1.bf16.msra.mxu0 0
        %2283 = vmatprep.subr.bf16.mxu0 0
        %2284 = vmatpush1.bf16.msra.mxu0 0
        %2285 = vmatprep.mubr.bf16.mxu0 0
        %2286 = vmatmul.mubr.bf16.gmra.mrb[0].mxu0 %v2178
        %v2287 = vpop.f32.mrb[0].mxu0
        %v2288 = vadd.f32 %v2203, %v2287
        %v2289 = vpop.f32.mrb[0].mxu0
        %v2290 = vpop.f32.mrb[0].mxu0
        %v2291 = vadd.f32 %v2203, %v2290
        %v2292 = vpop.f32.mrb[0].mxu0
        %2293 = vmatprep.mubr.bf16.mxu0 0
        %2294 = vmatmul.mubr.bf16.gmra.mrb[0].mxu0 %v2179
        %v2295 = vpop.f32.mrb[0].mxu0
        %v2296 = vadd.f32 %v2203, %v2295
        %v2297 = vpop.f32.mrb[0].mxu0
        %v2298 = vpop.f32.mrb[0].mxu0
        %v2299 = vadd.f32 %v2203, %v2298
        %v2300 = vpop.f32.mrb[0].mxu0
        %2301 = vmatprep.mubr.bf16.mxu0 0
        %2302 = vmatmul.mubr.bf16.gmra.mrb[0].mxu0 %v2180
        %v2303 = vpop.f32.mrb[0].mxu0
        %v2304 = vadd.f32 %v2203, %v2303
        %v2305 = vpop.f32.mrb[0].mxu0
        %v2306 = vpop.f32.mrb[0].mxu0
        %v2307 = vadd.f32 %v2203, %v2306
        %v2308 = vpop.f32.mrb[0].mxu0
        %2309 = vmatprep.mubr.bf16.mxu0 0
        %2310 = vmatmul.mubr.bf16.gmra.mrb[0].mxu0 %v2181
        %v2311 = vpop.f32.mrb[0].mxu0
        %v2312 = vadd.f32 %v2203, %v2311
        %v2313 = vpop.f32.mrb[0].mxu0
        %v2314 = vpop.f32.mrb[0].mxu0
        %v2315 = vadd.f32 %v2203, %v2314
        %v2316 = vpop.f32.mrb[0].mxu0
        %2317 = vdwg.mxu0
        %v2318 = vld [vmem:[%s298] sm:$0xff]
        %v2319 = vld [vmem:[%s298 + $0x8] sm:$0xff]
        %v2320 = vld [vmem:[%s298 + $0x10] sm:$0xff]
        %v2321 = vld [vmem:[%s298 + $0x18] sm:$0xff]
        %v2322 = vld [vmem:[%s298 + $0x20] sm:$0xff]
        %v2323 = vld [vmem:[%s298 + $0x28] sm:$0xff]
        %v2324 = vld [vmem:[%s298 + $0x30] sm:$0xff]
        %v2325 = vld [vmem:[%s298 + $0x38] sm:$0xff]
        %v2326 = vadd.f32 %v2288, %v2318
        %v2327 = vadd.f32 %v2291, %v2319
        %v2328 = vadd.f32 %v2296, %v2320
        %v2329 = vadd.f32 %v2299, %v2321
        %v2330 = vadd.f32 %v2304, %v2322
        %v2331 = vadd.f32 %v2307, %v2323
        %v2332 = vadd.f32 %v2312, %v2324
        %v2333 = vadd.f32 %v2315, %v2325
        %v2334 = vmax.f32 %v2326, 0.0
        %v2335 = vmax.f32 %v2327, 0.0
        %v2336 = vmax.f32 %v2328, 0.0
        %v2337 = vmax.f32 %v2329, 0.0
        %v2338 = vmax.f32 %v2330, 0.0
        %v2339 = vmax.f32 %v2331, 0.0
        %v2340 = vmax.f32 %v2332, 0.0
        %v2341 = vmax.f32 %v2333, 0.0
        %2342 = vst [vmem:[%s340] sm:$0xff] %v2334
        %2343 = vst [vmem:[%s340 + $0x8] sm:$0xff] %v2335
        %2344 = vst [vmem:[%s340 + $0x10] sm:$0xff] %v2336
        %2345 = vst [vmem:[%s340 + $0x18] sm:$0xff] %v2337
        %2346 = vst [vmem:[%s340 + $0x20] sm:$0xff] %v2338
        %2347 = vst [vmem:[%s340 + $0x28] sm:$0xff] %v2339
        %2348 = vst [vmem:[%s340 + $0x30] sm:$0xff] %v2340
        %2349 = vst [vmem:[%s340 + $0x38] sm:$0xff] %v2341
        %s2350 = sand.u32 %s186, 1
        %s2351 = scalar_lea.sflag [#allocation5], %s2350
        %s2352 = sand.u32 %s186, 1
        %s2353 = smul.addr %s2352, 64
        %s2354 = scalar_lea.vmem [#allocation11], %s2353
        // Predicated region
        $region65: #{tpu_custom_call.1} parent=47 // pred_check
          %p2355 = pneg %p196
        $region66: #{tpu_custom_call.1} parent=47 // pred_check_branch
          %2357 = sbr.rel (%p2355) target = $region68
        $region67: #{tpu_custom_call.1} parent=47 // pred_region
          %s2359 = ssub.s32 1024, 1024
          %2360 = vsyncadd %s2351, %s2359
          %s2361 = smul.addr %s26, 8
          %s2362 = smul.addr %s2361, 128
          %s2363 = scalar_lea.hbm %s7, %s2362
          %s2364 = sshll.u32 %s2354, 4
          %s2365 = int_to_ptr.vmem [resolvable:$true] %s2364
          %2370 = dma.vmem_to_hbm [thread:$0]  %s2365, 1024, %s2363, %s2351, 128, 128, 8
        $region68: #{tpu_custom_call.1} parent=47 // pred_fallthru
          _
      $region48: #{tpu_custom_call.1} parent=5 // pred_fallthru
        _
      %p2371 = scmp.le.s32.totalorder 2, %s21
      // Predicated region
      $region69: #{tpu_custom_call.1} parent=5 // pred_check
        %p2372 = pneg %p2371
      $region70: #{tpu_custom_call.1} parent=5 // pred_check_branch
        %2374 = sbr.rel (%p2372) target = $region72
      $region71: #{tpu_custom_call.1} parent=5 // pred_region
        %s2375 = ssub.s32 %s21, 2
        // Predicated region
        $region73: #{tpu_custom_call.1} parent=71 // pred_check
          %p2376 = pneg %p202
        $region74: #{tpu_custom_call.1} parent=71 // pred_check_branch
          %2378 = sbr.rel (%p2376) target = $region76
        $region75: #{tpu_custom_call.1} parent=71 // pred_region
          %s2379 = sand.u32 %s187, 1
          %s2380 = scalar_lea.sflag [#allocation5], %s2379
          %s2381 = sand.u32 %s187, 1
          %s2382 = smul.addr %s2381, 64
          %s2383 = scalar_lea.vmem [#allocation11], %s2382
          %2384 = dma.done %s2380, 1024
        $region76: #{tpu_custom_call.1} parent=71 // pred_fallthru
          _
      $region72: #{tpu_custom_call.1} parent=5 // pred_fallthru
        _
    $region6: #{tpu_custom_call.1} parent=1 // loop_footer
      %s25 = sadd.s32 1, %s21
    $region7: #{tpu_custom_call.1} parent=1 // loop_footer_branch
      %20 = sbr.rel target = $region3
    $region8: #{tpu_custom_call.1} parent=1 // loop_exit
      _
    %2385 = vsyncpa [#allocation4], 1
    %s2386 = scalar_lea.sflag [#allocation4], 1
    %2387 = vsyncpa %s2386, 1
    %2388 = vsyncpa [#allocation7], 1
    %2389 = vsyncpa [#allocation10], 1
    %2390 = vsyncpa [#allocation5], 1
    %s2391 = scalar_lea.sflag [#allocation5], 1
    %2392 = vsyncpa %s2391, 1

</llo_original>
